<compile_context>
chip_gen: v6e
topology: v6e:2x2x1
jax: 0.10.0
libtpu: 0.0.40
codegen_flags: <defaults>
</compile_context>

<pallas_src>
import functools

import jax
import jax.numpy as jnp
from jax.experimental import pallas as pl
from jax.experimental.pallas import tpu as pltpu

IN_F = 28 * 28        # 784
H1, H2, NUM_CLASSES = 300, 100, 10
H1P, H2P, OUTP = 384, 128, 128   # lane-padded feature dims


def _round_up(n, m):
    return (n + m - 1) // m * m


# --------------------------------------------------------------------------- #
# Kernel: one batch tile, whole MLP in VMEM (weights resident across the grid)
# --------------------------------------------------------------------------- #
def fc1_kernel(x_ref, w1_ref, b1_ref, w2_ref, b2_ref, w3_ref, b3_ref, o_ref):
    """
    x_ref : (TILE_B, 784)  f32  (cast to bf16 here, not in the wrapper)
    w1    : (784, 384) bf16, b1 : (1, 384) f32   (BN1 folded in)
    w2    : (384, 128) bf16, b2 : (1, 128) f32   (BN2 folded in)
    w3    : (128, 128) bf16, b3 : (1, 128) f32
    o_ref : (TILE_B, 128)  bf16 (only first 10 columns meaningful)
    """
    x = x_ref[...].astype(jnp.bfloat16)      # VPU cast; keeps the HBM stream f32-only

    # fc1 (+ folded BN1) + ReLU -- accumulate in f32, feed next MXU pass in bf16
    h1 = jnp.dot(x, w1_ref[...], preferred_element_type=jnp.float32) + b1_ref[...]
    h1 = jnp.maximum(h1, 0.0).astype(jnp.bfloat16)

    # fc2 (+ folded BN2) + ReLU
    h2 = jnp.dot(h1, w2_ref[...], preferred_element_type=jnp.float32) + b2_ref[...]
    h2 = jnp.maximum(h2, 0.0).astype(jnp.bfloat16)

    # fc3 (logits) -- f32 accumulate, bf16 lane-dense store
    out = jnp.dot(h2, w3_ref[...], preferred_element_type=jnp.float32) + b3_ref[...]
    o_ref[...] = out.astype(jnp.bfloat16)


# --------------------------------------------------------------------------- #
# Wrapper
# --------------------------------------------------------------------------- #
@functools.partial(jax.jit, static_argnames=("num_classes", "tile_b"))
def fc1_forward(x_nchw, kparams, num_classes=NUM_CLASSES, tile_b=1024):
    w1, b1, w2, b2, w3, b3 = kparams
    B = x_nchw.shape[0]

    # torch.flatten(x, 1): NCHW -> (B, C*H*W). Keep f32; bf16 cast happens in-kernel.
    x = x_nchw.reshape(B, -1)
    if x.dtype != jnp.float32:
        x = x.astype(jnp.float32)

    # Batch tiling. Large tiles amortize the ~0.35 us/grid-step overhead; the
    # ragged last block is handled by Pallas (rows independent; junk rows are
    # discarded by the [:B] slice below). Only tiny non-8-aligned batches pad.
    if B < tile_b:
        tile_b = _round_up(B, 8)
    b_total = B
    if tile_b > B:
        b_total = tile_b
        x = jnp.pad(x, ((0, b_total - B), (0, 0)))
    grid = (pl.cdiv(b_total, tile_b),)

    x_spec = pl.BlockSpec((tile_b, IN_F), lambda i: (i, 0))
    out_spec = pl.BlockSpec((tile_b, OUTP), lambda i: (i, 0))

    def resident(arr):  # full-extent, same block every grid step -> stays in VMEM
        return pl.BlockSpec(arr.shape, lambda i: (0, 0))

    flops = 2 * b_total * (IN_F * H1P + H1P * H2P + H2P * OUTP)
    bytes_accessed = (
        x.size * 4                                   # f32 activations in
        + (w1.size + w2.size + w3.size) * 2          # bf16 weights (resident)
        + (b1.size + b2.size + b3.size) * 4          # f32 biases
        + b_total * OUTP * 2                         # bf16 logits out
    )

    out = pl.pallas_call(
        fc1_kernel,
        out_shape=jax.ShapeDtypeStruct((b_total, OUTP), jnp.bfloat16),
        grid=grid,
        in_specs=[x_spec,
                  resident(w1), resident(b1),
                  resident(w2), resident(b2),
                  resident(w3), resident(b3)],
        out_specs=out_spec,
        compiler_params=pltpu.CompilerParams(
            # "parallel" lets megacore shard the batch grid when it has >= 2 steps
            # (on v7x, pltpu.CORE_PARALLEL is worth trying for large batches).
            dimension_semantics=("parallel",),
            # v5e default scoped VMEM is 16 MiB; 32 MiB keeps tile_b=1024..2048
            # (f32 x tile double-buffered) safe on every generation.
            vmem_limit_bytes=32 * 1024 * 1024),
        cost_estimate=pl.CostEstimate(
            flops=flops, transcendentals=0, bytes_accessed=bytes_accessed),
    )(x, w1, b1, w2, b2, w3, b3)

    return out[:B, :num_classes].astype(jnp.float32)


# --------------------------------------------------------------------------- #
# Parameter construction (PyTorch-equivalent raw params) + fold/pad for kernel
# --------------------------------------------------------------------------- #
def make_raw_params(key, num_classes=NUM_CLASSES):
    """Deterministic synthetic parameters matching the PyTorch module's shapes."""
    ks = jax.random.split(key, 6)

    def linear(kw, kb, fan_in, fan_out):
        # PyTorch Linear default init: U(-1/sqrt(fan_in), 1/sqrt(fan_in))
        bound = 1.0 / jnp.sqrt(jnp.float32(fan_in))
        w = jax.random.uniform(kw, (fan_in, fan_out), jnp.float32, -bound, bound)
        b = jax.random.uniform(kb, (fan_out,), jnp.float32, -bound, bound)
        return w, b

    w1, b1 = linear(ks[0], ks[1], IN_F, H1)
    w2, b2 = linear(ks[2], ks[3], H1, H2)
    w3, b3 = linear(ks[4], ks[5], H2, num_classes)

    def bn(n):  # BatchNorm1d inference-mode defaults
        return dict(gamma=jnp.ones((n,), jnp.float32),
                    beta=jnp.zeros((n,), jnp.float32),
                    mean=jnp.zeros((n,), jnp.float32),
                    var=jnp.ones((n,), jnp.float32))

    return dict(w1=w1, b1=b1, bn1=bn(H1), w2=w2, b2=b2, bn2=bn(H2), w3=w3, b3=b3)


def fold_and_pad_params(raw, eps=1e-5):
    """Fold BN into Linear, zero-pad feature dims to lane multiples, cast W to bf16."""
    def fold(w, b, bn):
        scale = bn["gamma"] / jnp.sqrt(bn["var"] + eps)
        shift = bn["beta"] - bn["mean"] * scale
        return w * scale[None, :], b * scale + shift

    w1f, b1f = fold(raw["w1"], raw["b1"], raw["bn1"])
    w2f, b2f = fold(raw["w2"], raw["b2"], raw["bn2"])
    w3f, b3f = raw["w3"], raw["b3"]

    def pad_w(w, rows, cols):
        return jnp.pad(w, ((0, rows - w.shape[0]), (0, cols - w.shape[1])))

    def pad_b(b, cols):
        return jnp.pad(b, (0, cols - b.shape[0])).reshape(1, cols)

    w1p = pad_w(w1f, IN_F, H1P).astype(jnp.bfloat16)
    w2p = pad_w(w2f, H1P, H2P).astype(jnp.bfloat16)
    w3p = pad_w(w3f, H2P, OUTP).astype(jnp.bfloat16)
    b1p = pad_b(b1f, H1P).astype(jnp.float32)
    b2p = pad_b(b2f, H2P).astype(jnp.float32)
    b3p = pad_b(b3f, OUTP).astype(jnp.float32)
    return (w1p, b1p, w2p, b2p, w3p, b3p)


# --------------------------------------------------------------------------- #
# Plain-JAX f32 reference of the original module (for sanity checking)
# --------------------------------------------------------------------------- #
def fc1_reference(x_nchw, raw, eps=1e-5):
    # TODO(synk): BatchNorm1d is implemented in inference mode (running stats);
    # training-mode batch statistics are out of scope for this forward kernel.
    x = x_nchw.reshape(x_nchw.shape[0], -1).astype(jnp.float32)

    def bn_apply(h, bn):
        scale = bn["gamma"] / jnp.sqrt(bn["var"] + eps)
        shift = bn["beta"] - bn["mean"] * scale
        return h * scale + shift

    h1 = jnp.maximum(bn_apply(x @ raw["w1"] + raw["b1"], raw["bn1"]), 0.0)
    h2 = jnp.maximum(bn_apply(h1 @ raw["w2"] + raw["b2"], raw["bn2"]), 0.0)
    return h2 @ raw["w3"] + raw["b3"]


if __name__ == "__main__":
    key = jax.random.PRNGKey(0)
    kp, kx = jax.random.split(key)

    raw_params = make_raw_params(kp, num_classes=NUM_CLASSES)
    kparams = fold_and_pad_params(raw_params)

    # Small MNIST-like batch: (B, 1, 28, 28) NCHW
    x = jax.random.normal(kx, (8, 1, 28, 28), jnp.float32)

    out = fc1_forward(x, kparams)
    out = jax.block_until_ready(out)

    ref = fc1_reference(x, raw_params)
    assert out.shape == (8, NUM_CLASSES)
    # bf16 weights/activations/logits inside the kernel -> looser tolerance than f32.
    assert jnp.allclose(out, ref, atol=5e-2, rtol=5e-2), (
        f"max abs err = {jnp.max(jnp.abs(out - ref))}")

    print("KERNEL_OK")
</pallas_src>

<mosaic_0001>
module attributes {stable_mosaic.version = 11 : i64} {
  func.func @fc1_kernel(%arg0: i32, %arg1: memref<8x784xf32, #tpu.memory_space<vmem>>, %arg2: memref<784x384xbf16, #tpu.memory_space<vmem>>, %arg3: memref<1x384xf32, #tpu.memory_space<vmem>>, %arg4: memref<384x128xbf16, #tpu.memory_space<vmem>>, %arg5: memref<1x128xf32, #tpu.memory_space<vmem>>, %arg6: memref<128x128xbf16, #tpu.memory_space<vmem>>, %arg7: memref<1x128xf32, #tpu.memory_space<vmem>>, %arg8: memref<8x128xbf16, #tpu.memory_space<vmem>>) attributes {dimension_semantics = [#tpu.dimension_semantics<parallel>], iteration_bounds = array<i64: 1>, scalar_prefetch = 0 : i64, scratch_operands = 0 : i64, tpu.core_type = #tpu.core_type<tc>, window_params = [{transform_indices = @transform_0, window_bounds = array<i64: 8, 784>}, {pipeline_mode = #tpu.pipeline_mode<synchronous>, transform_indices = @transform_1, window_bounds = array<i64: 784, 384>}, {pipeline_mode = #tpu.pipeline_mode<synchronous>, transform_indices = @transform_2, window_bounds = array<i64: 1, 384>}, {pipeline_mode = #tpu.pipeline_mode<synchronous>, transform_indices = @transform_3, window_bounds = array<i64: 384, 128>}, {pipeline_mode = #tpu.pipeline_mode<synchronous>, transform_indices = @transform_4, window_bounds = array<i64: 1, 128>}, {pipeline_mode = #tpu.pipeline_mode<synchronous>, transform_indices = @transform_5, window_bounds = array<i64: 128, 128>}, {pipeline_mode = #tpu.pipeline_mode<synchronous>, transform_indices = @transform_6, window_bounds = array<i64: 1, 128>}, {transform_indices = @transform_7, window_bounds = array<i64: 8, 128>}]} {
    %c0 = arith.constant 0 : index
    %c0_0 = arith.constant 0 : index
    %0 = vector.load %arg1[%c0, %c0_0] : memref<8x784xf32, #tpu.memory_space<vmem>>, vector<8x784xf32>
    %1 = arith.truncf %0 : vector<8x784xf32> to vector<8x784xbf16>
    %c0_1 = arith.constant 0 : index
    %c0_2 = arith.constant 0 : index
    %2 = vector.load %arg2[%c0_1, %c0_2] : memref<784x384xbf16, #tpu.memory_space<vmem>>, vector<784x384xbf16>
    %cst = arith.constant dense<0.000000e+00> : vector<8x384xf32>
    %3 = tpu.matmul %1, %2, %cst {dimension_numbers = #tpu.dot_dimension_numbers<[1], [0], [0], [1], [0, 0, 1, 1], [], []>} : vector<8x784xbf16>, vector<784x384xbf16>, vector<8x384xf32> -> vector<8x384xf32>
    %c0_3 = arith.constant 0 : index
    %c0_4 = arith.constant 0 : index
    %4 = vector.load %arg3[%c0_3, %c0_4] : memref<1x384xf32, #tpu.memory_space<vmem>>, vector<1x384xf32>
    %5 = vector.broadcast %4 : vector<1x384xf32> to vector<8x384xf32>
    %6 = arith.addf %3, %5 : vector<8x384xf32>
    %cst_5 = arith.constant 0.000000e+00 : f32
    %7 = vector.broadcast %cst_5 : f32 to vector<8x384xf32>
    %8 = arith.maximumf %6, %7 : vector<8x384xf32>
    %9 = arith.truncf %8 : vector<8x384xf32> to vector<8x384xbf16>
    %c0_6 = arith.constant 0 : index
    %c0_7 = arith.constant 0 : index
    %10 = vector.load %arg4[%c0_6, %c0_7] : memref<384x128xbf16, #tpu.memory_space<vmem>>, vector<384x128xbf16>
    %cst_8 = arith.constant dense<0.000000e+00> : vector<8x128xf32>
    %11 = tpu.matmul %9, %10, %cst_8 {dimension_numbers = #tpu.dot_dimension_numbers<[1], [0], [0], [1], [0, 0, 1, 1], [], []>} : vector<8x384xbf16>, vector<384x128xbf16>, vector<8x128xf32> -> vector<8x128xf32>
    %c0_9 = arith.constant 0 : index
    %c0_10 = arith.constant 0 : index
    %12 = vector.load %arg5[%c0_9, %c0_10] : memref<1x128xf32, #tpu.memory_space<vmem>>, vector<1x128xf32>
    %13 = vector.broadcast %12 : vector<1x128xf32> to vector<8x128xf32>
    %14 = arith.addf %11, %13 : vector<8x128xf32>
    %cst_11 = arith.constant 0.000000e+00 : f32
    %15 = vector.broadcast %cst_11 : f32 to vector<8x128xf32>
    %16 = arith.maximumf %14, %15 : vector<8x128xf32>
    %17 = arith.truncf %16 : vector<8x128xf32> to vector<8x128xbf16>
    %c0_12 = arith.constant 0 : index
    %c0_13 = arith.constant 0 : index
    %18 = vector.load %arg6[%c0_12, %c0_13] : memref<128x128xbf16, #tpu.memory_space<vmem>>, vector<128x128xbf16>
    %cst_14 = arith.constant dense<0.000000e+00> : vector<8x128xf32>
    %19 = tpu.matmul %17, %18, %cst_14 {dimension_numbers = #tpu.dot_dimension_numbers<[1], [0], [0], [1], [0, 0, 1, 1], [], []>} : vector<8x128xbf16>, vector<128x128xbf16>, vector<8x128xf32> -> vector<8x128xf32>
    %c0_15 = arith.constant 0 : index
    %c0_16 = arith.constant 0 : index
    %20 = vector.load %arg7[%c0_15, %c0_16] : memref<1x128xf32, #tpu.memory_space<vmem>>, vector<1x128xf32>
    %21 = vector.broadcast %20 : vector<1x128xf32> to vector<8x128xf32>
    %22 = arith.addf %19, %21 : vector<8x128xf32>
    %23 = arith.truncf %22 : vector<8x128xf32> to vector<8x128xbf16>
    %c0_17 = arith.constant 0 : index
    %c0_18 = arith.constant 0 : index
    %24 = vector.load %arg8[%c0_17, %c0_18] : memref<8x128xbf16, #tpu.memory_space<vmem>>, vector<8x128xbf16>
    tpu.vector_store %arg8[%c0_17, %c0_18], %23 {strides = array<i32>} : memref<8x128xbf16, #tpu.memory_space<vmem>>, vector<8x128xbf16>,
    return
  }
  func.func @transform_0(%arg0: i32) -> (i32, i32) {
    %c0_i32 = arith.constant 0 : i32
    %c0_i32_0 = arith.constant 0 : i32
    return %arg0, %c0_i32 : i32, i32
  }
  func.func @transform_1(%arg0: i32) -> (i32, i32) {
    %c0_i32 = arith.constant 0 : i32
    %c0_i32_0 = arith.constant 0 : i32
    %c0_i32_1 = arith.constant 0 : i32
    return %c0_i32, %c0_i32_0 : i32, i32
  }
  func.func @transform_2(%arg0: i32) -> (i32, i32) {
    %c0_i32 = arith.constant 0 : i32
    %c0_i32_0 = arith.constant 0 : i32
    %c0_i32_1 = arith.constant 0 : i32
    return %c0_i32, %c0_i32_0 : i32, i32
  }
  func.func @transform_3(%arg0: i32) -> (i32, i32) {
    %c0_i32 = arith.constant 0 : i32
    %c0_i32_0 = arith.constant 0 : i32
    %c0_i32_1 = arith.constant 0 : i32
    return %c0_i32, %c0_i32_0 : i32, i32
  }
  func.func @transform_4(%arg0: i32) -> (i32, i32) {
    %c0_i32 = arith.constant 0 : i32
    %c0_i32_0 = arith.constant 0 : i32
    %c0_i32_1 = arith.constant 0 : i32
    return %c0_i32, %c0_i32_0 : i32, i32
  }
  func.func @transform_5(%arg0: i32) -> (i32, i32) {
    %c0_i32 = arith.constant 0 : i32
    %c0_i32_0 = arith.constant 0 : i32
    %c0_i32_1 = arith.constant 0 : i32
    return %c0_i32, %c0_i32_0 : i32, i32
  }
  func.func @transform_6(%arg0: i32) -> (i32, i32) {
    %c0_i32 = arith.constant 0 : i32
    %c0_i32_0 = arith.constant 0 : i32
    %c0_i32_1 = arith.constant 0 : i32
    return %c0_i32, %c0_i32_0 : i32, i32
  }
  func.func @transform_7(%arg0: i32) -> (i32, i32) {
    %c0_i32 = arith.constant 0 : i32
    %c0_i32_0 = arith.constant 0 : i32
    return %arg0, %c0_i32 : i32, i32
  }
}

</mosaic_0001>

<llo_original>
// kernel: fc1_forward.1
$region0: #{fc1_forward.1}
  #allocation0 [shape = 'u32[]', space=smem, size = 0x4, offset = 0x4, fixed_abs, tag = 'smem constant byte address 0x4 - core index']
  #allocation1 [shape = 'u32[144,128]{1,0:T(1,128)}', space=vmem, size = 0x12000, scoped, tag = 'internal scratch']
  %s0 = inlined_call_operand.vmem [shape: f32[8,784], index: 0, kind: input, shape index: {}]
  %s1 = inlined_call_operand.hbm [shape: bf16[784,384], index: 1, kind: input, shape index: {}]
  %s2 = inlined_call_operand.vmem [shape: f32[1,384], index: 2, kind: input, shape index: {}]
  %s3 = inlined_call_operand.vmem [shape: bf16[384,128], index: 3, kind: input, shape index: {}]
  %s4 = inlined_call_operand.vmem [shape: f32[1,128], index: 4, kind: input, shape index: {}]
  %s5 = inlined_call_operand.vmem [shape: bf16[128,128], index: 5, kind: input, shape index: {}]
  %s6 = inlined_call_operand.vmem [shape: f32[1,128], index: 6, kind: input, shape index: {}]
  %s7 = inlined_call_operand.vmem [shape: bf16[8,128], index: 7, kind: output, shape index: {}]
  %s8 = sld [smem:[#allocation0]]
  $region42: #{fc1_forward.1} parent=0
    _
  %s10 = ssub.s32 1, %s8
  %s11 = scalar_select 0, %s10, %s8
  $region1: #{fc1_forward.1} parent=0
    #allocation2 [shape = 'u8[602112]{0}', space=vmem, size = 0x93000, scoped, tag = 'input window, operand 1, single buffered']
    #allocation3 [shape = 's32[1]{0}', space=sflag, size = 0x4, scoped, tag = 'scoped memory for fc1_forward.1']
    %12 = vsyncpa [#allocation3], 0
    // Predicated region
    $region2: #{fc1_forward.1} parent=1 // pred_check
      _
    $region3: #{fc1_forward.1} parent=1 // pred_check_branch
      %14 = sbr.rel (0) target = $region5
    $region4: #{fc1_forward.1} parent=1 // pred_region
      _
    $region5: #{fc1_forward.1} parent=1 // pred_fallthru
      _
    // Predicated region
    $region6: #{fc1_forward.1} parent=1 // pred_check
      _
    $region7: #{fc1_forward.1} parent=1 // pred_check_branch
      %16 = sbr.rel (0) target = $region9
    $region8: #{fc1_forward.1} parent=1 // pred_region
      %s18 = ssub.s32 18816, 18816
      %19 = vsyncadd [#allocation3], %s18
      %s20 = sshll.u32 [#allocation2], 4
      %s21 = int_to_ptr.vmem [resolvable:$true] %s20
      %26 = dma.hbm_to_vmem [thread:$0]  %s1, 18816, %s21, [#allocation3], 192, 192, 12
    $region9: #{fc1_forward.1} parent=1 // pred_fallthru
      _
    // Predicated region
    $region10: #{fc1_forward.1} parent=1 // pred_check
      _
    $region11: #{fc1_forward.1} parent=1 // pred_check_branch
      %28 = sbr.rel (0) target = $region13
    $region12: #{fc1_forward.1} parent=1 // pred_region
      _
    $region13: #{fc1_forward.1} parent=1 // pred_fallthru
      _
    // Predicated region
    $region14: #{fc1_forward.1} parent=1 // pred_check
      _
    $region15: #{fc1_forward.1} parent=1 // pred_check_branch
      %30 = sbr.rel (0) target = $region17
    $region16: #{fc1_forward.1} parent=1 // pred_region
      _
    $region17: #{fc1_forward.1} parent=1 // pred_fallthru
      _
    // Predicated region
    $region18: #{fc1_forward.1} parent=1 // pred_check
      _
    $region19: #{fc1_forward.1} parent=1 // pred_check_branch
      %32 = sbr.rel (0) target = $region21
    $region20: #{fc1_forward.1} parent=1 // pred_region
      _
    $region21: #{fc1_forward.1} parent=1 // pred_fallthru
      _
    // Predicated region
    $region22: #{fc1_forward.1} parent=1 // pred_check
      _
    $region23: #{fc1_forward.1} parent=1 // pred_check_branch
      %34 = sbr.rel (0) target = $region25
    $region24: #{fc1_forward.1} parent=1 // pred_region
      _
    $region25: #{fc1_forward.1} parent=1 // pred_fallthru
      _
    // Predicated region
    $region26: #{fc1_forward.1} parent=1 // pred_check
      _
    $region27: #{fc1_forward.1} parent=1 // pred_check_branch
      %36 = sbr.rel (0) target = $region29
    $region28: #{fc1_forward.1} parent=1 // pred_region
      _
    $region29: #{fc1_forward.1} parent=1 // pred_fallthru
      _
    // Predicated region
    $region30: #{fc1_forward.1} parent=1 // pred_check
      _
    $region31: #{fc1_forward.1} parent=1 // pred_check_branch
      %38 = sbr.rel (0) target = $region33
    $region32: #{fc1_forward.1} parent=1 // pred_region
      %39 = dma.done [#allocation3], 18816
    $region33: #{fc1_forward.1} parent=1 // pred_fallthru
      _
    %v41 = vld [vmem:[%s0] sm:$0xff]
    %v42 = vld [vmem:[%s0 + $0x8] sm:$0xff]
    %v43 = vld [vmem:[%s0 + $0x10] sm:$0xff]
    %v44 = vld [vmem:[%s0 + $0x18] sm:$0xff]
    %v45 = vld [vmem:[%s0 + $0x20] sm:$0xff]
    %v46 = vld [vmem:[%s0 + $0x28] sm:$0xff]
    %v47 = vld [vmem:[%s0 + $0x30] sm:$0xff]
    %v48 = vpack.c.bf16 %v41, %v41
    %v49 = vpack.c.bf16 %v42, %v42
    %v50 = vpack.c.bf16 %v43, %v43
    %v51 = vpack.c.bf16 %v44, %v44
    %v52 = vpack.c.bf16 %v45, %v45
    %v53 = vpack.c.bf16 %v46, %v46
    %v54 = vpack.c.bf16 %v47, %v47
    %v55 = vld [vmem:[#allocation2] sm:$0xff]
    %v56 = vld [vmem:[#allocation2 + $0x8] sm:$0xf]
    %v57 = vld [vmem:[#allocation2 + $0xc] sm:$0xff]
    %v58 = vld [vmem:[#allocation2 + $0x14] sm:$0xf]
    %v59 = vld [vmem:[#allocation2 + $0x18] sm:$0xff]
    %v60 = vld [vmem:[#allocation2 + $0x20] sm:$0xf]
    %v61 = vld [vmem:[#allocation2 + $0x24] sm:$0xff]
    %v62 = vld [vmem:[#allocation2 + $0x2c] sm:$0xf]
    %v63 = vld [vmem:[#allocation2 + $0x30] sm:$0xff]
    %v64 = vld [vmem:[#allocation2 + $0x38] sm:$0xf]
    %v65 = vld [vmem:[#allocation2 + $0x3c] sm:$0xff]
    %v66 = vld [vmem:[#allocation2 + $0x44] sm:$0xf]
    %v67 = vld [vmem:[#allocation2 + $0x48] sm:$0xff]
    %v68 = vld [vmem:[#allocation2 + $0x50] sm:$0xf]
    %v69 = vld [vmem:[#allocation2 + $0x54] sm:$0xff]
    %v70 = vld [vmem:[#allocation2 + $0x5c] sm:$0xf]
    %v71 = vld [vmem:[#allocation2 + $0x60] sm:$0xff]
    %v72 = vld [vmem:[#allocation2 + $0x68] sm:$0xf]
    %v73 = vld [vmem:[#allocation2 + $0x6c] sm:$0xff]
    %v74 = vld [vmem:[#allocation2 + $0x74] sm:$0xf]
    %v75 = vld [vmem:[#allocation2 + $0x78] sm:$0xff]
    %v76 = vld [vmem:[#allocation2 + $0x80] sm:$0xf]
    %v77 = vld [vmem:[#allocation2 + $0x84] sm:$0xff]
    %v78 = vld [vmem:[#allocation2 + $0x8c] sm:$0xf]
    %v79 = vld [vmem:[#allocation2 + $0x90] sm:$0xff]
    %v80 = vld [vmem:[#allocation2 + $0x98] sm:$0xf]
    %v81 = vld [vmem:[#allocation2 + $0x9c] sm:$0xff]
    %v82 = vld [vmem:[#allocation2 + $0xa4] sm:$0xf]
    %v83 = vld [vmem:[#allocation2 + $0xa8] sm:$0xff]
    %v84 = vld [vmem:[#allocation2 + $0xb0] sm:$0xf]
    %v85 = vld [vmem:[#allocation2 + $0xb4] sm:$0xff]
    %v86 = vld [vmem:[#allocation2 + $0xbc] sm:$0xf]
    %v87 = vld [vmem:[#allocation2 + $0xc0] sm:$0xff]
    %v88 = vld [vmem:[#allocation2 + $0xc8] sm:$0xf]
    %v89 = vld [vmem:[#allocation2 + $0xcc] sm:$0xff]
    %v90 = vld [vmem:[#allocation2 + $0xd4] sm:$0xf]
    %v91 = vld [vmem:[#allocation2 + $0xd8] sm:$0xff]
    %v92 = vld [vmem:[#allocation2 + $0xe0] sm:$0xf]
    %v93 = vld [vmem:[#allocation2 + $0xe4] sm:$0xff]
    %v94 = vld [vmem:[#allocation2 + $0xec] sm:$0xf]
    %v95 = vld [vmem:[#allocation2 + $0xf0] sm:$0xff]
    %v96 = vld [vmem:[#allocation2 + $0xf8] sm:$0xf]
    %v97 = vld [vmem:[#allocation2 + $0xfc] sm:$0xff]
    %v98 = vld [vmem:[#allocation2 + $0x104] sm:$0xf]
    %v99 = vld [vmem:[#allocation2 + $0x108] sm:$0xff]
    %v100 = vld [vmem:[#allocation2 + $0x110] sm:$0xf]
    %v101 = vld [vmem:[#allocation2 + $0x114] sm:$0xff]
    %v102 = vld [vmem:[#allocation2 + $0x11c] sm:$0xf]
    %v103 = vld [vmem:[#allocation2 + $0x120] sm:$0xff]
    %v104 = vld [vmem:[#allocation2 + $0x128] sm:$0xf]
    %v105 = vld [vmem:[#allocation2 + $0x12c] sm:$0xff]
    %v106 = vld [vmem:[#allocation2 + $0x134] sm:$0xf]
    %v107 = vld [vmem:[#allocation2 + $0x138] sm:$0xff]
    %v108 = vld [vmem:[#allocation2 + $0x140] sm:$0xf]
    %v109 = vld [vmem:[#allocation2 + $0x144] sm:$0xff]
    %v110 = vld [vmem:[#allocation2 + $0x14c] sm:$0xf]
    %v111 = vld [vmem:[#allocation2 + $0x150] sm:$0xff]
    %v112 = vld [vmem:[#allocation2 + $0x158] sm:$0xf]
    %v113 = vld [vmem:[#allocation2 + $0x15c] sm:$0xff]
    %v114 = vld [vmem:[#allocation2 + $0x164] sm:$0xf]
    %v115 = vld [vmem:[#allocation2 + $0x168] sm:$0xff]
    %v116 = vld [vmem:[#allocation2 + $0x170] sm:$0xf]
    %v117 = vld [vmem:[#allocation2 + $0x174] sm:$0xff]
    %v118 = vld [vmem:[#allocation2 + $0x17c] sm:$0xf]
    %v119 = vld [vmem:[#allocation2 + $0x180] sm:$0xff]
    %v120 = vld [vmem:[#allocation2 + $0x188] sm:$0xf]
    %v121 = vld [vmem:[#allocation2 + $0x18c] sm:$0xff]
    %v122 = vld [vmem:[#allocation2 + $0x194] sm:$0xf]
    %v123 = vld [vmem:[#allocation2 + $0x198] sm:$0xff]
    %v124 = vld [vmem:[#allocation2 + $0x1a0] sm:$0xf]
    %v125 = vld [vmem:[#allocation2 + $0x1a4] sm:$0xff]
    %v126 = vld [vmem:[#allocation2 + $0x1ac] sm:$0xf]
    %v127 = vld [vmem:[#allocation2 + $0x1b0] sm:$0xff]
    %v128 = vld [vmem:[#allocation2 + $0x1b8] sm:$0xf]
    %v129 = vld [vmem:[#allocation2 + $0x1bc] sm:$0xff]
    %v130 = vld [vmem:[#allocation2 + $0x1c4] sm:$0xf]
    %v131 = vld [vmem:[#allocation2 + $0x1c8] sm:$0xff]
    %v132 = vld [vmem:[#allocation2 + $0x1d0] sm:$0xf]
    %v133 = vld [vmem:[#allocation2 + $0x1d4] sm:$0xff]
    %v134 = vld [vmem:[#allocation2 + $0x1dc] sm:$0xf]
    %v135 = vld [vmem:[#allocation2 + $0x1e0] sm:$0xff]
    %v136 = vld [vmem:[#allocation2 + $0x1e8] sm:$0xf]
    %v137 = vld [vmem:[#allocation2 + $0x1ec] sm:$0xff]
    %v138 = vld [vmem:[#allocation2 + $0x1f4] sm:$0xf]
    %v139 = vld [vmem:[#allocation2 + $0x1f8] sm:$0xff]
    %v140 = vld [vmem:[#allocation2 + $0x200] sm:$0xf]
    %v141 = vld [vmem:[#allocation2 + $0x204] sm:$0xff]
    %v142 = vld [vmem:[#allocation2 + $0x20c] sm:$0xf]
    %v143 = vld [vmem:[#allocation2 + $0x210] sm:$0xff]
    %v144 = vld [vmem:[#allocation2 + $0x218] sm:$0xf]
    %v145 = vld [vmem:[#allocation2 + $0x21c] sm:$0xff]
    %v146 = vld [vmem:[#allocation2 + $0x224] sm:$0xf]
    %v147 = vld [vmem:[#allocation2 + $0x228] sm:$0xff]
    %v148 = vld [vmem:[#allocation2 + $0x230] sm:$0xf]
    %v149 = vld [vmem:[#allocation2 + $0x234] sm:$0xff]
    %v150 = vld [vmem:[#allocation2 + $0x23c] sm:$0xf]
    %v151 = vld [vmem:[#allocation2 + $0x240] sm:$0xff]
    %v152 = vld [vmem:[#allocation2 + $0x248] sm:$0xf]
    %v153 = vld [vmem:[#allocation2 + $0x24c] sm:$0xff]
    %v154 = vld [vmem:[#allocation2 + $0x254] sm:$0xf]
    %v155 = vld [vmem:[#allocation2 + $0x258] sm:$0xff]
    %v156 = vld [vmem:[#allocation2 + $0x260] sm:$0xf]
    %v157 = vld [vmem:[#allocation2 + $0x264] sm:$0xff]
    %v158 = vld [vmem:[#allocation2 + $0x26c] sm:$0xf]
    %v159 = vld [vmem:[#allocation2 + $0x270] sm:$0xff]
    %v160 = vld [vmem:[#allocation2 + $0x278] sm:$0xf]
    %v161 = vld [vmem:[#allocation2 + $0x27c] sm:$0xff]
    %v162 = vld [vmem:[#allocation2 + $0x284] sm:$0xf]
    %v163 = vld [vmem:[#allocation2 + $0x288] sm:$0xff]
    %v164 = vld [vmem:[#allocation2 + $0x290] sm:$0xf]
    %v165 = vld [vmem:[#allocation2 + $0x294] sm:$0xff]
    %v166 = vld [vmem:[#allocation2 + $0x29c] sm:$0xf]
    %v167 = vld [vmem:[#allocation2 + $0x2a0] sm:$0xff]
    %v168 = vld [vmem:[#allocation2 + $0x2a8] sm:$0xf]
    %v169 = vld [vmem:[#allocation2 + $0x2ac] sm:$0xff]
    %v170 = vld [vmem:[#allocation2 + $0x2b4] sm:$0xf]
    %v171 = vld [vmem:[#allocation2 + $0x2b8] sm:$0xff]
    %v172 = vld [vmem:[#allocation2 + $0x2c0] sm:$0xf]
    %v173 = vld [vmem:[#allocation2 + $0x2c4] sm:$0xff]
    %v174 = vld [vmem:[#allocation2 + $0x2cc] sm:$0xf]
    %v175 = vld [vmem:[#allocation2 + $0x2d0] sm:$0xff]
    %v176 = vld [vmem:[#allocation2 + $0x2d8] sm:$0xf]
    %v177 = vld [vmem:[#allocation2 + $0x2dc] sm:$0xff]
    %v178 = vld [vmem:[#allocation2 + $0x2e4] sm:$0xf]
    %v179 = vld [vmem:[#allocation2 + $0x2e8] sm:$0xff]
    %v180 = vld [vmem:[#allocation2 + $0x2f0] sm:$0xf]
    %v181 = vld [vmem:[#allocation2 + $0x2f4] sm:$0xff]
    %v182 = vld [vmem:[#allocation2 + $0x2fc] sm:$0xf]
    %v183 = vld [vmem:[#allocation2 + $0x300] sm:$0xff]
    %v184 = vld [vmem:[#allocation2 + $0x308] sm:$0xf]
    %v185 = vld [vmem:[#allocation2 + $0x30c] sm:$0xff]
    %v186 = vld [vmem:[#allocation2 + $0x314] sm:$0xf]
    %v187 = vld [vmem:[#allocation2 + $0x318] sm:$0xff]
    %v188 = vld [vmem:[#allocation2 + $0x320] sm:$0xf]
    %v189 = vld [vmem:[#allocation2 + $0x324] sm:$0xff]
    %v190 = vld [vmem:[#allocation2 + $0x32c] sm:$0xf]
    %v191 = vld [vmem:[#allocation2 + $0x330] sm:$0xff]
    %v192 = vld [vmem:[#allocation2 + $0x338] sm:$0xf]
    %v193 = vld [vmem:[#allocation2 + $0x33c] sm:$0xff]
    %v194 = vld [vmem:[#allocation2 + $0x344] sm:$0xf]
    %v195 = vld [vmem:[#allocation2 + $0x348] sm:$0xff]
    %v196 = vld [vmem:[#allocation2 + $0x350] sm:$0xf]
    %v197 = vld [vmem:[#allocation2 + $0x354] sm:$0xff]
    %v198 = vld [vmem:[#allocation2 + $0x35c] sm:$0xf]
    %v199 = vld [vmem:[#allocation2 + $0x360] sm:$0xff]
    %v200 = vld [vmem:[#allocation2 + $0x368] sm:$0xf]
    %v201 = vld [vmem:[#allocation2 + $0x36c] sm:$0xff]
    %v202 = vld [vmem:[#allocation2 + $0x374] sm:$0xf]
    %v203 = vld [vmem:[#allocation2 + $0x378] sm:$0xff]
    %v204 = vld [vmem:[#allocation2 + $0x380] sm:$0xf]
    %v205 = vld [vmem:[#allocation2 + $0x384] sm:$0xff]
    %v206 = vld [vmem:[#allocation2 + $0x38c] sm:$0xf]
    %v207 = vld [vmem:[#allocation2 + $0x390] sm:$0xff]
    %v208 = vld [vmem:[#allocation2 + $0x398] sm:$0xf]
    %v209 = vld [vmem:[#allocation2 + $0x39c] sm:$0xff]
    %v210 = vld [vmem:[#allocation2 + $0x3a4] sm:$0xf]
    %v211 = vld [vmem:[#allocation2 + $0x3a8] sm:$0xff]
    %v212 = vld [vmem:[#allocation2 + $0x3b0] sm:$0xf]
    %v213 = vld [vmem:[#allocation2 + $0x3b4] sm:$0xff]
    %v214 = vld [vmem:[#allocation2 + $0x3bc] sm:$0xf]
    %v215 = vld [vmem:[#allocation2 + $0x3c0] sm:$0xff]
    %v216 = vld [vmem:[#allocation2 + $0x3c8] sm:$0xf]
    %v217 = vld [vmem:[#allocation2 + $0x3cc] sm:$0xff]
    %v218 = vld [vmem:[#allocation2 + $0x3d4] sm:$0xf]
    %v219 = vld [vmem:[#allocation2 + $0x3d8] sm:$0xff]
    %v220 = vld [vmem:[#allocation2 + $0x3e0] sm:$0xf]
    %v221 = vld [vmem:[#allocation2 + $0x3e4] sm:$0xff]
    %v222 = vld [vmem:[#allocation2 + $0x3ec] sm:$0xf]
    %v223 = vld [vmem:[#allocation2 + $0x3f0] sm:$0xff]
    %v224 = vld [vmem:[#allocation2 + $0x3f8] sm:$0xf]
    %v225 = vld [vmem:[#allocation2 + $0x3fc] sm:$0xff]
    %v226 = vld [vmem:[#allocation2 + $0x404] sm:$0xf]
    %v227 = vld [vmem:[#allocation2 + $0x408] sm:$0xff]
    %v228 = vld [vmem:[#allocation2 + $0x410] sm:$0xf]
    %v229 = vld [vmem:[#allocation2 + $0x414] sm:$0xff]
    %v230 = vld [vmem:[#allocation2 + $0x41c] sm:$0xf]
    %v231 = vld [vmem:[#allocation2 + $0x420] sm:$0xff]
    %v232 = vld [vmem:[#allocation2 + $0x428] sm:$0xf]
    %v233 = vld [vmem:[#allocation2 + $0x42c] sm:$0xff]
    %v234 = vld [vmem:[#allocation2 + $0x434] sm:$0xf]
    %v235 = vld [vmem:[#allocation2 + $0x438] sm:$0xff]
    %v236 = vld [vmem:[#allocation2 + $0x440] sm:$0xf]
    %v237 = vld [vmem:[#allocation2 + $0x444] sm:$0xff]
    %v238 = vld [vmem:[#allocation2 + $0x44c] sm:$0xf]
    %v239 = vld [vmem:[#allocation2 + $0x450] sm:$0xff]
    %v240 = vld [vmem:[#allocation2 + $0x458] sm:$0xf]
    %v241 = vld [vmem:[#allocation2 + $0x45c] sm:$0xff]
    %v242 = vld [vmem:[#allocation2 + $0x464] sm:$0xf]
    %v243 = vld [vmem:[#allocation2 + $0x468] sm:$0xff]
    %v244 = vld [vmem:[#allocation2 + $0x470] sm:$0xf]
    %v245 = vld [vmem:[#allocation2 + $0x474] sm:$0xff]
    %v246 = vld [vmem:[#allocation2 + $0x47c] sm:$0xf]
    %v247 = vld [vmem:[#allocation2 + $0x480] sm:$0xff]
    %v248 = vld [vmem:[#allocation2 + $0x488] sm:$0xf]
    %v249 = vld [vmem:[#allocation2 + $0x48c] sm:$0xff]
    %v250 = vld [vmem:[#allocation2 + $0x494] sm:$0xf]
    %v251 = vld [vmem:[%s2] sm:$0x7]
    %v253 = vlaneseq
    %v254 = vshrl.u32 %v253, 7
    %v255 = vsub.s32 0, %v254
    %v256 = vrot.slane %v251, %v255
    %v257 = vlaneseq
    %v258 = vshrl.u32 %v257, 7
    %v259 = vsub.s32 1, %v258
    %v260 = vrot.slane %v251, %v259
    %v261 = vlaneseq
    %v262 = vshrl.u32 %v261, 7
    %v263 = vsub.s32 2, %v262
    %v264 = vrot.slane %v251, %v263
    %v464 = vunpack.c.l.b16 %v55
    %v465 = vunpack.c.h.b16 %v55
    %v466 = vunpack.c.l.b16 %v56
    %v467 = vunpack.c.l.b16 %v57
    %v468 = vunpack.c.h.b16 %v57
    %v469 = vunpack.c.l.b16 %v58
    %v470 = vunpack.c.l.b16 %v59
    %v471 = vunpack.c.h.b16 %v59
    %v472 = vunpack.c.l.b16 %v60
    %v473 = vunpack.c.l.b16 %v61
    %v474 = vunpack.c.h.b16 %v61
    %v475 = vunpack.c.l.b16 %v62
    %v476 = vunpack.c.l.b16 %v63
    %v477 = vunpack.c.h.b16 %v63
    %v478 = vunpack.c.l.b16 %v64
    %v479 = vunpack.c.l.b16 %v65
    %v480 = vunpack.c.h.b16 %v65
    %v481 = vunpack.c.l.b16 %v66
    %v482 = vunpack.c.l.b16 %v67
    %v483 = vunpack.c.h.b16 %v67
    %v484 = vunpack.c.l.b16 %v68
    %v485 = vunpack.c.l.b16 %v69
    %v486 = vunpack.c.h.b16 %v69
    %v487 = vunpack.c.l.b16 %v70
    %v488 = vunpack.c.l.b16 %v71
    %v489 = vunpack.c.h.b16 %v71
    %v490 = vunpack.c.l.b16 %v72
    %v491 = vunpack.c.l.b16 %v73
    %v492 = vunpack.c.h.b16 %v73
    %v493 = vunpack.c.l.b16 %v74
    %v494 = vunpack.c.l.b16 %v75
    %v495 = vunpack.c.h.b16 %v75
    %v496 = vunpack.c.l.b16 %v76
    %v497 = vunpack.c.l.b16 %v77
    %v498 = vunpack.c.h.b16 %v77
    %v499 = vunpack.c.l.b16 %v78
    %v500 = vunpack.c.l.b16 %v79
    %v501 = vunpack.c.h.b16 %v79
    %v502 = vunpack.c.l.b16 %v80
    %v503 = vunpack.c.l.b16 %v81
    %v504 = vunpack.c.h.b16 %v81
    %v505 = vunpack.c.l.b16 %v82
    %v506 = vunpack.c.l.b16 %v83
    %v507 = vunpack.c.h.b16 %v83
    %v508 = vunpack.c.l.b16 %v84
    %v509 = vunpack.c.l.b16 %v85
    %v510 = vunpack.c.h.b16 %v85
    %v511 = vunpack.c.l.b16 %v86
    %v512 = vunpack.c.l.b16 %v87
    %v513 = vunpack.c.h.b16 %v87
    %v514 = vunpack.c.l.b16 %v88
    %v515 = vunpack.c.l.b16 %v89
    %v516 = vunpack.c.h.b16 %v89
    %v517 = vunpack.c.l.b16 %v90
    %v518 = vunpack.c.l.b16 %v91
    %v519 = vunpack.c.h.b16 %v91
    %v520 = vunpack.c.l.b16 %v92
    %v521 = vunpack.c.l.b16 %v93
    %v522 = vunpack.c.h.b16 %v93
    %v523 = vunpack.c.l.b16 %v94
    %v524 = vunpack.c.l.b16 %v95
    %v525 = vunpack.c.h.b16 %v95
    %v526 = vunpack.c.l.b16 %v96
    %v527 = vunpack.c.l.b16 %v97
    %v528 = vunpack.c.h.b16 %v97
    %v529 = vunpack.c.l.b16 %v98
    %v530 = vunpack.c.l.b16 %v99
    %v531 = vunpack.c.h.b16 %v99
    %v532 = vunpack.c.l.b16 %v100
    %v533 = vunpack.c.l.b16 %v101
    %v534 = vunpack.c.h.b16 %v101
    %v535 = vunpack.c.l.b16 %v102
    %v536 = vunpack.c.l.b16 %v103
    %v537 = vunpack.c.h.b16 %v103
    %v538 = vunpack.c.l.b16 %v104
    %v539 = vunpack.c.l.b16 %v105
    %v540 = vunpack.c.h.b16 %v105
    %v541 = vunpack.c.l.b16 %v106
    %v542 = vunpack.c.l.b16 %v107
    %v543 = vunpack.c.h.b16 %v107
    %v544 = vunpack.c.l.b16 %v108
    %v545 = vunpack.c.l.b16 %v109
    %v546 = vunpack.c.h.b16 %v109
    %v547 = vunpack.c.l.b16 %v110
    %v548 = vunpack.c.l.b16 %v111
    %v549 = vunpack.c.h.b16 %v111
    %v550 = vunpack.c.l.b16 %v112
    %v551 = vunpack.c.l.b16 %v113
    %v552 = vunpack.c.h.b16 %v113
    %v553 = vunpack.c.l.b16 %v114
    %v554 = vunpack.c.l.b16 %v115
    %v555 = vunpack.c.h.b16 %v115
    %v556 = vunpack.c.l.b16 %v116
    %v557 = vunpack.c.l.b16 %v117
    %v558 = vunpack.c.h.b16 %v117
    %v559 = vunpack.c.l.b16 %v118
    %v560 = vunpack.c.l.b16 %v119
    %v561 = vunpack.c.h.b16 %v119
    %v562 = vunpack.c.l.b16 %v120
    %v563 = vunpack.c.l.b16 %v121
    %v564 = vunpack.c.h.b16 %v121
    %v565 = vunpack.c.l.b16 %v122
    %v566 = vunpack.c.l.b16 %v123
    %v567 = vunpack.c.h.b16 %v123
    %v568 = vunpack.c.l.b16 %v124
    %v569 = vunpack.c.l.b16 %v125
    %v570 = vunpack.c.h.b16 %v125
    %v571 = vunpack.c.l.b16 %v126
    %v572 = vunpack.c.l.b16 %v127
    %v573 = vunpack.c.h.b16 %v127
    %v574 = vunpack.c.l.b16 %v128
    %v575 = vunpack.c.l.b16 %v129
    %v576 = vunpack.c.h.b16 %v129
    %v577 = vunpack.c.l.b16 %v130
    %v578 = vunpack.c.l.b16 %v131
    %v579 = vunpack.c.h.b16 %v131
    %v580 = vunpack.c.l.b16 %v132
    %v581 = vunpack.c.l.b16 %v133
    %v582 = vunpack.c.h.b16 %v133
    %v583 = vunpack.c.l.b16 %v134
    %v584 = vunpack.c.l.b16 %v135
    %v585 = vunpack.c.h.b16 %v135
    %v586 = vunpack.c.l.b16 %v136
    %v587 = vunpack.c.l.b16 %v137
    %v588 = vunpack.c.h.b16 %v137
    %v589 = vunpack.c.l.b16 %v138
    %v590 = vunpack.c.l.b16 %v139
    %v591 = vunpack.c.h.b16 %v139
    %v592 = vunpack.c.l.b16 %v140
    %v593 = vunpack.c.l.b16 %v141
    %v594 = vunpack.c.h.b16 %v141
    %v595 = vunpack.c.l.b16 %v142
    %v596 = vunpack.c.l.b16 %v143
    %v597 = vunpack.c.h.b16 %v143
    %v598 = vunpack.c.l.b16 %v144
    %v599 = vunpack.c.l.b16 %v145
    %v600 = vunpack.c.h.b16 %v145
    %v601 = vunpack.c.l.b16 %v146
    %v602 = vunpack.c.l.b16 %v147
    %v603 = vunpack.c.h.b16 %v147
    %v604 = vunpack.c.l.b16 %v148
    %v605 = vunpack.c.l.b16 %v149
    %v606 = vunpack.c.h.b16 %v149
    %v607 = vunpack.c.l.b16 %v150
    %v608 = vunpack.c.l.b16 %v151
    %v609 = vunpack.c.h.b16 %v151
    %v610 = vunpack.c.l.b16 %v152
    %v611 = vunpack.c.l.b16 %v153
    %v612 = vunpack.c.h.b16 %v153
    %v613 = vunpack.c.l.b16 %v154
    %v614 = vunpack.c.l.b16 %v155
    %v615 = vunpack.c.h.b16 %v155
    %v616 = vunpack.c.l.b16 %v156
    %v617 = vunpack.c.l.b16 %v157
    %v618 = vunpack.c.h.b16 %v157
    %v619 = vunpack.c.l.b16 %v158
    %v620 = vunpack.c.l.b16 %v159
    %v621 = vunpack.c.h.b16 %v159
    %v622 = vunpack.c.l.b16 %v160
    %v623 = vunpack.c.l.b16 %v161
    %v624 = vunpack.c.h.b16 %v161
    %v625 = vunpack.c.l.b16 %v162
    %v626 = vunpack.c.l.b16 %v163
    %v627 = vunpack.c.h.b16 %v163
    %v628 = vunpack.c.l.b16 %v164
    %v629 = vunpack.c.l.b16 %v165
    %v630 = vunpack.c.h.b16 %v165
    %v631 = vunpack.c.l.b16 %v166
    %v632 = vunpack.c.l.b16 %v167
    %v633 = vunpack.c.h.b16 %v167
    %v634 = vunpack.c.l.b16 %v168
    %v635 = vunpack.c.l.b16 %v169
    %v636 = vunpack.c.h.b16 %v169
    %v637 = vunpack.c.l.b16 %v170
    %v638 = vunpack.c.l.b16 %v171
    %v639 = vunpack.c.h.b16 %v171
    %v640 = vunpack.c.l.b16 %v172
    %v641 = vunpack.c.l.b16 %v173
    %v642 = vunpack.c.h.b16 %v173
    %v643 = vunpack.c.l.b16 %v174
    %v644 = vunpack.c.l.b16 %v175
    %v645 = vunpack.c.h.b16 %v175
    %v646 = vunpack.c.l.b16 %v176
    %v647 = vunpack.c.l.b16 %v177
    %v648 = vunpack.c.h.b16 %v177
    %v649 = vunpack.c.l.b16 %v178
    %v650 = vunpack.c.l.b16 %v179
    %v651 = vunpack.c.h.b16 %v179
    %v652 = vunpack.c.l.b16 %v180
    %v653 = vunpack.c.l.b16 %v181
    %v654 = vunpack.c.h.b16 %v181
    %v655 = vunpack.c.l.b16 %v182
    %v656 = vunpack.c.l.b16 %v183
    %v657 = vunpack.c.h.b16 %v183
    %v658 = vunpack.c.l.b16 %v184
    %v659 = vunpack.c.l.b16 %v185
    %v660 = vunpack.c.h.b16 %v185
    %v661 = vunpack.c.l.b16 %v186
    %v662 = vunpack.c.l.b16 %v187
    %v663 = vunpack.c.h.b16 %v187
    %v664 = vunpack.c.l.b16 %v188
    %v665 = vunpack.c.l.b16 %v189
    %v666 = vunpack.c.h.b16 %v189
    %v667 = vunpack.c.l.b16 %v190
    %v668 = vunpack.c.l.b16 %v191
    %v669 = vunpack.c.h.b16 %v191
    %v670 = vunpack.c.l.b16 %v192
    %v671 = vunpack.c.l.b16 %v193
    %v672 = vunpack.c.h.b16 %v193
    %v673 = vunpack.c.l.b16 %v194
    %v674 = vunpack.c.l.b16 %v195
    %v675 = vunpack.c.h.b16 %v195
    %v676 = vunpack.c.l.b16 %v196
    %v677 = vunpack.c.l.b16 %v197
    %v678 = vunpack.c.h.b16 %v197
    %v679 = vunpack.c.l.b16 %v198
    %v680 = vunpack.c.l.b16 %v199
    %v681 = vunpack.c.h.b16 %v199
    %v682 = vunpack.c.l.b16 %v200
    %v683 = vunpack.c.l.b16 %v201
    %v684 = vunpack.c.h.b16 %v201
    %v685 = vunpack.c.l.b16 %v202
    %v686 = vunpack.c.l.b16 %v203
    %v687 = vunpack.c.h.b16 %v203
    %v688 = vunpack.c.l.b16 %v204
    %v689 = vunpack.c.l.b16 %v205
    %v690 = vunpack.c.h.b16 %v205
    %v691 = vunpack.c.l.b16 %v206
    %v692 = vunpack.c.l.b16 %v207
    %v693 = vunpack.c.h.b16 %v207
    %v694 = vunpack.c.l.b16 %v208
    %v695 = vunpack.c.l.b16 %v209
    %v696 = vunpack.c.h.b16 %v209
    %v697 = vunpack.c.l.b16 %v210
    %v698 = vunpack.c.l.b16 %v211
    %v699 = vunpack.c.h.b16 %v211
    %v700 = vunpack.c.l.b16 %v212
    %v701 = vunpack.c.l.b16 %v213
    %v702 = vunpack.c.h.b16 %v213
    %v703 = vunpack.c.l.b16 %v214
    %v704 = vunpack.c.l.b16 %v215
    %v705 = vunpack.c.h.b16 %v215
    %v706 = vunpack.c.l.b16 %v216
    %v707 = vunpack.c.l.b16 %v217
    %v708 = vunpack.c.h.b16 %v217
    %v709 = vunpack.c.l.b16 %v218
    %v710 = vunpack.c.l.b16 %v219
    %v711 = vunpack.c.h.b16 %v219
    %v712 = vunpack.c.l.b16 %v220
    %v713 = vunpack.c.l.b16 %v221
    %v714 = vunpack.c.h.b16 %v221
    %v715 = vunpack.c.l.b16 %v222
    %v716 = vunpack.c.l.b16 %v223
    %v717 = vunpack.c.h.b16 %v223
    %v718 = vunpack.c.l.b16 %v224
    %v719 = vunpack.c.l.b16 %v225
    %v720 = vunpack.c.h.b16 %v225
    %v721 = vunpack.c.l.b16 %v226
    %v722 = vunpack.c.l.b16 %v227
    %v723 = vunpack.c.h.b16 %v227
    %v724 = vunpack.c.l.b16 %v228
    %v725 = vunpack.c.l.b16 %v229
    %v726 = vunpack.c.h.b16 %v229
    %v727 = vunpack.c.l.b16 %v230
    %v728 = vunpack.c.l.b16 %v231
    %v729 = vunpack.c.h.b16 %v231
    %v730 = vunpack.c.l.b16 %v232
    %v731 = vunpack.c.l.b16 %v233
    %v732 = vunpack.c.h.b16 %v233
    %v733 = vunpack.c.l.b16 %v234
    %v734 = vunpack.c.l.b16 %v235
    %v735 = vunpack.c.h.b16 %v235
    %v736 = vunpack.c.l.b16 %v236
    %v737 = vunpack.c.l.b16 %v237
    %v738 = vunpack.c.h.b16 %v237
    %v739 = vunpack.c.l.b16 %v238
    %v740 = vunpack.c.l.b16 %v239
    %v741 = vunpack.c.h.b16 %v239
    %v742 = vunpack.c.l.b16 %v240
    %v743 = vunpack.c.l.b16 %v241
    %v744 = vunpack.c.h.b16 %v241
    %v745 = vunpack.c.l.b16 %v242
    %v746 = vunpack.c.l.b16 %v243
    %v747 = vunpack.c.h.b16 %v243
    %v748 = vunpack.c.l.b16 %v244
    %v749 = vunpack.c.l.b16 %v245
    %v750 = vunpack.c.h.b16 %v245
    %v751 = vunpack.c.l.b16 %v246
    %v752 = vunpack.c.l.b16 %v247
    %v753 = vunpack.c.h.b16 %v247
    %v754 = vunpack.c.l.b16 %v248
    %v755 = vunpack.c.l.b16 %v249
    %v756 = vunpack.c.h.b16 %v249
    %v757 = vunpack.c.l.b16 %v250
    %v758 = vpack.c.b16 %v467, %v464
    %v759 = vpack.c.b16 %v468, %v465
    %v760 = vpack.c.b16 %v469, %v466
    %v761 = vpack.c.b16 %v473, %v470
    %v762 = vpack.c.b16 %v474, %v471
    %v763 = vpack.c.b16 %v475, %v472
    %v764 = vpack.c.b16 %v479, %v476
    %v765 = vpack.c.b16 %v480, %v477
    %v766 = vpack.c.b16 %v481, %v478
    %v767 = vpack.c.b16 %v485, %v482
    %v768 = vpack.c.b16 %v486, %v483
    %v769 = vpack.c.b16 %v487, %v484
    %v770 = vpack.c.b16 %v491, %v488
    %v771 = vpack.c.b16 %v492, %v489
    %v772 = vpack.c.b16 %v493, %v490
    %v773 = vpack.c.b16 %v497, %v494
    %v774 = vpack.c.b16 %v498, %v495
    %v775 = vpack.c.b16 %v499, %v496
    %v776 = vpack.c.b16 %v503, %v500
    %v777 = vpack.c.b16 %v504, %v501
    %v778 = vpack.c.b16 %v505, %v502
    %v779 = vpack.c.b16 %v509, %v506
    %v780 = vpack.c.b16 %v510, %v507
    %v781 = vpack.c.b16 %v511, %v508
    %v782 = vpack.c.b16 %v515, %v512
    %v783 = vpack.c.b16 %v516, %v513
    %v784 = vpack.c.b16 %v517, %v514
    %v785 = vpack.c.b16 %v521, %v518
    %v786 = vpack.c.b16 %v522, %v519
    %v787 = vpack.c.b16 %v523, %v520
    %v788 = vpack.c.b16 %v527, %v524
    %v789 = vpack.c.b16 %v528, %v525
    %v790 = vpack.c.b16 %v529, %v526
    %v791 = vpack.c.b16 %v533, %v530
    %v792 = vpack.c.b16 %v534, %v531
    %v793 = vpack.c.b16 %v535, %v532
    %v794 = vpack.c.b16 %v539, %v536
    %v795 = vpack.c.b16 %v540, %v537
    %v796 = vpack.c.b16 %v541, %v538
    %v797 = vpack.c.b16 %v545, %v542
    %v798 = vpack.c.b16 %v546, %v543
    %v799 = vpack.c.b16 %v547, %v544
    %v800 = vpack.c.b16 %v551, %v548
    %v801 = vpack.c.b16 %v552, %v549
    %v802 = vpack.c.b16 %v553, %v550
    %v803 = vpack.c.b16 %v557, %v554
    %v804 = vpack.c.b16 %v558, %v555
    %v805 = vpack.c.b16 %v559, %v556
    %v806 = vpack.c.b16 %v563, %v560
    %v807 = vpack.c.b16 %v564, %v561
    %v808 = vpack.c.b16 %v565, %v562
    %v809 = vpack.c.b16 %v569, %v566
    %v810 = vpack.c.b16 %v570, %v567
    %v811 = vpack.c.b16 %v571, %v568
    %v812 = vpack.c.b16 %v575, %v572
    %v813 = vpack.c.b16 %v576, %v573
    %v814 = vpack.c.b16 %v577, %v574
    %v815 = vpack.c.b16 %v581, %v578
    %v816 = vpack.c.b16 %v582, %v579
    %v817 = vpack.c.b16 %v583, %v580
    %v818 = vpack.c.b16 %v587, %v584
    %v819 = vpack.c.b16 %v588, %v585
    %v820 = vpack.c.b16 %v589, %v586
    %v821 = vpack.c.b16 %v593, %v590
    %v822 = vpack.c.b16 %v594, %v591
    %v823 = vpack.c.b16 %v595, %v592
    %v824 = vpack.c.b16 %v599, %v596
    %v825 = vpack.c.b16 %v600, %v597
    %v826 = vpack.c.b16 %v601, %v598
    %v827 = vpack.c.b16 %v605, %v602
    %v828 = vpack.c.b16 %v606, %v603
    %v829 = vpack.c.b16 %v607, %v604
    %v830 = vpack.c.b16 %v611, %v608
    %v831 = vpack.c.b16 %v612, %v609
    %v832 = vpack.c.b16 %v613, %v610
    %v833 = vpack.c.b16 %v617, %v614
    %v834 = vpack.c.b16 %v618, %v615
    %v835 = vpack.c.b16 %v619, %v616
    %v836 = vpack.c.b16 %v623, %v620
    %v837 = vpack.c.b16 %v624, %v621
    %v838 = vpack.c.b16 %v625, %v622
    %v839 = vpack.c.b16 %v629, %v626
    %v840 = vpack.c.b16 %v630, %v627
    %v841 = vpack.c.b16 %v631, %v628
    %v842 = vpack.c.b16 %v635, %v632
    %v843 = vpack.c.b16 %v636, %v633
    %v844 = vpack.c.b16 %v637, %v634
    %v845 = vpack.c.b16 %v641, %v638
    %v846 = vpack.c.b16 %v642, %v639
    %v847 = vpack.c.b16 %v643, %v640
    %v848 = vpack.c.b16 %v647, %v644
    %v849 = vpack.c.b16 %v648, %v645
    %v850 = vpack.c.b16 %v649, %v646
    %v851 = vpack.c.b16 %v653, %v650
    %v852 = vpack.c.b16 %v654, %v651
    %v853 = vpack.c.b16 %v655, %v652
    %v854 = vpack.c.b16 %v659, %v656
    %v855 = vpack.c.b16 %v660, %v657
    %v856 = vpack.c.b16 %v661, %v658
    %v857 = vpack.c.b16 %v665, %v662
    %v858 = vpack.c.b16 %v666, %v663
    %v859 = vpack.c.b16 %v667, %v664
    %v860 = vpack.c.b16 %v671, %v668
    %v861 = vpack.c.b16 %v672, %v669
    %v862 = vpack.c.b16 %v673, %v670
    %v863 = vpack.c.b16 %v677, %v674
    %v864 = vpack.c.b16 %v678, %v675
    %v865 = vpack.c.b16 %v679, %v676
    %v866 = vpack.c.b16 %v683, %v680
    %v867 = vpack.c.b16 %v684, %v681
    %v868 = vpack.c.b16 %v685, %v682
    %v869 = vpack.c.b16 %v689, %v686
    %v870 = vpack.c.b16 %v690, %v687
    %v871 = vpack.c.b16 %v691, %v688
    %v872 = vpack.c.b16 %v695, %v692
    %v873 = vpack.c.b16 %v696, %v693
    %v874 = vpack.c.b16 %v697, %v694
    %v875 = vpack.c.b16 %v701, %v698
    %v876 = vpack.c.b16 %v702, %v699
    %v877 = vpack.c.b16 %v703, %v700
    %v878 = vpack.c.b16 %v707, %v704
    %v879 = vpack.c.b16 %v708, %v705
    %v880 = vpack.c.b16 %v709, %v706
    %v881 = vpack.c.b16 %v713, %v710
    %v882 = vpack.c.b16 %v714, %v711
    %v883 = vpack.c.b16 %v715, %v712
    %v884 = vpack.c.b16 %v719, %v716
    %v885 = vpack.c.b16 %v720, %v717
    %v886 = vpack.c.b16 %v721, %v718
    %v887 = vpack.c.b16 %v725, %v722
    %v888 = vpack.c.b16 %v726, %v723
    %v889 = vpack.c.b16 %v727, %v724
    %v890 = vpack.c.b16 %v731, %v728
    %v891 = vpack.c.b16 %v732, %v729
    %v892 = vpack.c.b16 %v733, %v730
    %v893 = vpack.c.b16 %v737, %v734
    %v894 = vpack.c.b16 %v738, %v735
    %v895 = vpack.c.b16 %v739, %v736
    %v896 = vpack.c.b16 %v743, %v740
    %v897 = vpack.c.b16 %v744, %v741
    %v898 = vpack.c.b16 %v745, %v742
    %v899 = vpack.c.b16 %v749, %v746
    %v900 = vpack.c.b16 %v750, %v747
    %v901 = vpack.c.b16 %v751, %v748
    %v902 = vpack.c.b16 %v755, %v752
    %v903 = vpack.c.b16 %v756, %v753
    %v904 = vpack.c.b16 %v757, %v754
    %vm1052 = vcmask 130048
    %v1054 = vsel %vm1052, %v54, 0
    %1056 = vmatprep.subr.bf16.mxu0 %v780
    %1057 = vmatpush1.bf16.msra.mxu0 %v779
    %1058 = vmatprep.subr.bf16.mxu0 %v777
    %1059 = vmatpush1.bf16.msra.mxu0 %v776
    %1060 = vmatprep.subr.bf16.mxu0 %v774
    %1061 = vmatpush1.bf16.msra.mxu0 %v773
    %1062 = vmatprep.subr.bf16.mxu0 %v771
    %1063 = vmatpush1.bf16.msra.mxu0 %v770
    %1064 = vmatprep.subr.bf16.mxu0 %v768
    %1065 = vmatpush1.bf16.msra.mxu0 %v767
    %1066 = vmatprep.subr.bf16.mxu0 %v765
    %1067 = vmatpush1.bf16.msra.mxu0 %v764
    %1068 = vmatprep.subr.bf16.mxu0 %v762
    %1069 = vmatpush1.bf16.msra.mxu0 %v761
    %1070 = vmatprep.subr.bf16.mxu0 %v759
    %1071 = vmatpush1.bf16.msra.mxu0 %v758
    %1072 = vmatprep.subr.bf16.mxu0 %v804
    %1073 = vmatpush2.bf16.msra.mxu0 %v803
    %1074 = vmatprep.subr.bf16.mxu0 %v801
    %1075 = vmatpush2.bf16.msra.mxu0 %v800
    %1076 = vmatprep.subr.bf16.mxu0 %v798
    %1077 = vmatpush2.bf16.msra.mxu0 %v797
    %1078 = vmatprep.subr.bf16.mxu0 %v795
    %1079 = vmatpush2.bf16.msra.mxu0 %v794
    %1080 = vmatprep.subr.bf16.mxu0 %v792
    %1081 = vmatpush2.bf16.msra.mxu0 %v791
    %1082 = vmatprep.subr.bf16.mxu0 %v789
    %1083 = vmatpush2.bf16.msra.mxu0 %v788
    %1084 = vmatprep.subr.bf16.mxu0 %v786
    %1085 = vmatpush2.bf16.msra.mxu0 %v785
    %1086 = vmatprep.subr.bf16.mxu0 %v783
    %1087 = vmatpush2.bf16.msra.mxu0 %v782
    %1088 = vmatprep.mubr.bf16.mxu0 %v49
    %1089 = vmatmul.mubr.bf16.gmra.mxu0 %v48
    %v1090 = vpop.f32.mrf.mxu0
    %v1091 = vadd.f32 %v256, %v1090
    %v1092 = vpop.f32.mrf.mxu0
    %v1093 = vadd.f32 %v260, %v1092
    %v1094 = vpop.f32.mrf.mxu0
    %v1095 = vpop.f32.mrf.mxu0
    %1096 = vdwg.mxu0
    %1097 = vmatprep.subr.bf16.mxu0 %v828
    %1098 = vmatpush1.bf16.msra.mxu0 %v827
    %1099 = vmatprep.subr.bf16.mxu0 %v825
    %1100 = vmatpush1.bf16.msra.mxu0 %v824
    %1101 = vmatprep.subr.bf16.mxu0 %v822
    %1102 = vmatpush1.bf16.msra.mxu0 %v821
    %1103 = vmatprep.subr.bf16.mxu0 %v819
    %1104 = vmatpush1.bf16.msra.mxu0 %v818
    %1105 = vmatprep.subr.bf16.mxu0 %v816
    %1106 = vmatpush1.bf16.msra.mxu0 %v815
    %1107 = vmatprep.subr.bf16.mxu0 %v813
    %1108 = vmatpush1.bf16.msra.mxu0 %v812
    %1109 = vmatprep.subr.bf16.mxu0 %v810
    %1110 = vmatpush1.bf16.msra.mxu0 %v809
    %1111 = vmatprep.subr.bf16.mxu0 %v807
    %1112 = vmatpush1.bf16.msra.mxu0 %v806
    %1113 = vmatprep.subr.bf16.mxu0 %v852
    %1114 = vmatpush2.bf16.msra.mxu0 %v851
    %1115 = vmatprep.subr.bf16.mxu0 %v849
    %1116 = vmatpush2.bf16.msra.mxu0 %v848
    %1117 = vmatprep.subr.bf16.mxu0 %v846
    %1118 = vmatpush2.bf16.msra.mxu0 %v845
    %1119 = vmatprep.subr.bf16.mxu0 %v843
    %1120 = vmatpush2.bf16.msra.mxu0 %v842
    %1121 = vmatprep.subr.bf16.mxu0 %v840
    %1122 = vmatpush2.bf16.msra.mxu0 %v839
    %1123 = vmatprep.subr.bf16.mxu0 %v837
    %1124 = vmatpush2.bf16.msra.mxu0 %v836
    %1125 = vmatprep.subr.bf16.mxu0 %v834
    %1126 = vmatpush2.bf16.msra.mxu0 %v833
    %1127 = vmatprep.subr.bf16.mxu0 %v831
    %1128 = vmatpush2.bf16.msra.mxu0 %v830
    %1129 = vmatprep.mubr.bf16.mxu0 %v51
    %1130 = vmatmul.mubr.bf16.gmra.mxu0 %v50
    %v1131 = vpop.f32.mrf.mxu0
    %v1132 = vadd.f32 %v1091, %v1131
    %v1133 = vpop.f32.mrf.mxu0
    %v1134 = vadd.f32 %v1093, %v1133
    %v1135 = vpop.f32.mrf.mxu0
    %v1136 = vpop.f32.mrf.mxu0
    %1137 = vdwg.mxu0
    %1138 = vmatprep.subr.bf16.mxu0 %v876
    %1139 = vmatpush1.bf16.msra.mxu0 %v875
    %1140 = vmatprep.subr.bf16.mxu0 %v873
    %1141 = vmatpush1.bf16.msra.mxu0 %v872
    %1142 = vmatprep.subr.bf16.mxu0 %v870
    %1143 = vmatpush1.bf16.msra.mxu0 %v869
    %1144 = vmatprep.subr.bf16.mxu0 %v867
    %1145 = vmatpush1.bf16.msra.mxu0 %v866
    %1146 = vmatprep.subr.bf16.mxu0 %v864
    %1147 = vmatpush1.bf16.msra.mxu0 %v863
    %1148 = vmatprep.subr.bf16.mxu0 %v861
    %1149 = vmatpush1.bf16.msra.mxu0 %v860
    %1150 = vmatprep.subr.bf16.mxu0 %v858
    %1151 = vmatpush1.bf16.msra.mxu0 %v857
    %1152 = vmatprep.subr.bf16.mxu0 %v855
    %1153 = vmatpush1.bf16.msra.mxu0 %v854
    %1154 = vmatprep.subr.bf16.mxu0 %v900
    %1155 = vmatpush2.bf16.msra.mxu0 %v899
    %1156 = vmatprep.subr.bf16.mxu0 %v897
    %1157 = vmatpush2.bf16.msra.mxu0 %v896
    %1158 = vmatprep.subr.bf16.mxu0 %v894
    %1159 = vmatpush2.bf16.msra.mxu0 %v893
    %1160 = vmatprep.subr.bf16.mxu0 %v891
    %1161 = vmatpush2.bf16.msra.mxu0 %v890
    %1162 = vmatprep.subr.bf16.mxu0 %v888
    %1163 = vmatpush2.bf16.msra.mxu0 %v887
    %1164 = vmatprep.subr.bf16.mxu0 %v885
    %1165 = vmatpush2.bf16.msra.mxu0 %v884
    %1166 = vmatprep.subr.bf16.mxu0 %v882
    %1167 = vmatpush2.bf16.msra.mxu0 %v881
    %1168 = vmatprep.subr.bf16.mxu0 %v879
    %1169 = vmatpush2.bf16.msra.mxu0 %v878
    %1170 = vmatprep.mubr.bf16.mxu0 %v53
    %1171 = vmatmul.mubr.bf16.gmra.mxu0 %v52
    %v1172 = vpop.f32.mrf.mxu0
    %v1173 = vadd.f32 %v1132, %v1172
    %v1174 = vpop.f32.mrf.mxu0
    %v1175 = vadd.f32 %v1134, %v1174
    %v1176 = vpop.f32.mrf.mxu0
    %v1177 = vpop.f32.mrf.mxu0
    %1178 = vdwg.mxu0
    %1179 = vmatprep.subr.bf16.mxu0 0
    %1180 = vmatpush1.bf16.msra.mxu0 0
    %1181 = vmatprep.subr.bf16.mxu0 0
    %1182 = vmatpush1.bf16.msra.mxu0 0
    %1183 = vmatprep.subr.bf16.mxu0 0
    %1184 = vmatpush1.bf16.msra.mxu0 0
    %1185 = vmatprep.subr.bf16.mxu0 0
    %1186 = vmatpush1.bf16.msra.mxu0 0
    %1187 = vmatprep.subr.bf16.mxu0 0
    %1188 = vmatpush1.bf16.msra.mxu0 0
    %1189 = vmatprep.subr.bf16.mxu0 0
    %1190 = vmatpush1.bf16.msra.mxu0 0
    %1191 = vmatprep.subr.bf16.mxu0 0
    %1192 = vmatpush1.bf16.msra.mxu0 0
    %1193 = vmatprep.subr.bf16.mxu0 %v903
    %1194 = vmatpush1.bf16.msra.mxu0 %v902
    %1195 = vmatprep.subr.bf16.mxu0 0
    %1196 = vmatpush2.bf16.msra.mxu0 0
    %1197 = vmatprep.subr.bf16.mxu0 0
    %1198 = vmatpush2.bf16.msra.mxu0 0
    %1199 = vmatprep.subr.bf16.mxu0 0
    %1200 = vmatpush2.bf16.msra.mxu0 0
    %1201 = vmatprep.subr.bf16.mxu0 0
    %1202 = vmatpush2.bf16.msra.mxu0 0
    %1203 = vmatprep.subr.bf16.mxu0 0
    %1204 = vmatpush2.bf16.msra.mxu0 0
    %1205 = vmatprep.subr.bf16.mxu0 0
    %1206 = vmatpush2.bf16.msra.mxu0 0
    %1207 = vmatprep.subr.bf16.mxu0 0
    %1208 = vmatpush2.bf16.msra.mxu0 0
    %1209 = vmatprep.subr.bf16.mxu0 0
    %1210 = vmatpush2.bf16.msra.mxu0 0
    %1211 = vmatprep.mubr.bf16.mxu0 0
    %1212 = vmatmul.mubr.bf16.gmra.mxu0 %v1054
    %v1213 = vpop.f32.mrf.mxu0
    %v1214 = vadd.f32 %v1173, %v1213
    %v1215 = vpop.f32.mrf.mxu0
    %v1216 = vadd.f32 %v1175, %v1215
    %v1217 = vpop.f32.mrf.mxu0
    %v1218 = vpop.f32.mrf.mxu0
    %1219 = vdwg.mxu0
    %1220 = vmatprep.subr.bf16.mxu0 0
    %1221 = vmatpush1.bf16.msra.mxu0 %v781
    %1222 = vmatprep.subr.bf16.mxu0 0
    %1223 = vmatpush1.bf16.msra.mxu0 %v778
    %1224 = vmatprep.subr.bf16.mxu0 0
    %1225 = vmatpush1.bf16.msra.mxu0 %v775
    %1226 = vmatprep.subr.bf16.mxu0 0
    %1227 = vmatpush1.bf16.msra.mxu0 %v772
    %1228 = vmatprep.subr.bf16.mxu0 0
    %1229 = vmatpush1.bf16.msra.mxu0 %v769
    %1230 = vmatprep.subr.bf16.mxu0 0
    %1231 = vmatpush1.bf16.msra.mxu0 %v766
    %1232 = vmatprep.subr.bf16.mxu0 0
    %1233 = vmatpush1.bf16.msra.mxu0 %v763
    %1234 = vmatprep.subr.bf16.mxu0 0
    %1235 = vmatpush1.bf16.msra.mxu0 %v760
    %1236 = vmatprep.subr.bf16.mxu0 0
    %1237 = vmatpush2.bf16.msra.mxu0 %v805
    %1238 = vmatprep.subr.bf16.mxu0 0
    %1239 = vmatpush2.bf16.msra.mxu0 %v802
    %1240 = vmatprep.subr.bf16.mxu0 0
    %1241 = vmatpush2.bf16.msra.mxu0 %v799
    %1242 = vmatprep.subr.bf16.mxu0 0
    %1243 = vmatpush2.bf16.msra.mxu0 %v796
    %1244 = vmatprep.subr.bf16.mxu0 0
    %1245 = vmatpush2.bf16.msra.mxu0 %v793
    %1246 = vmatprep.subr.bf16.mxu0 0
    %1247 = vmatpush2.bf16.msra.mxu0 %v790
    %1248 = vmatprep.subr.bf16.mxu0 0
    %1249 = vmatpush2.bf16.msra.mxu0 %v787
    %1250 = vmatprep.subr.bf16.mxu0 0
    %1251 = vmatpush2.bf16.msra.mxu0 %v784
    %1252 = vmatprep.mubr.bf16.mxu0 %v49
    %1253 = vmatmul.mubr.bf16.gmra.mxu0 %v48
    %v1254 = vpop.f32.mrf.mxu0
    %v1255 = vadd.f32 %v264, %v1254
    %v1256 = vpop.f32.mrf.mxu0
    %v1257 = vpop.f32.mrf.mxu0
    %v1258 = vpop.f32.mrf.mxu0
    %1259 = vdwg.mxu0
    %1260 = vmatprep.subr.bf16.mxu0 0
    %1261 = vmatpush1.bf16.msra.mxu0 %v829
    %1262 = vmatprep.subr.bf16.mxu0 0
    %1263 = vmatpush1.bf16.msra.mxu0 %v826
    %1264 = vmatprep.subr.bf16.mxu0 0
    %1265 = vmatpush1.bf16.msra.mxu0 %v823
    %1266 = vmatprep.subr.bf16.mxu0 0
    %1267 = vmatpush1.bf16.msra.mxu0 %v820
    %1268 = vmatprep.subr.bf16.mxu0 0
    %1269 = vmatpush1.bf16.msra.mxu0 %v817
    %1270 = vmatprep.subr.bf16.mxu0 0
    %1271 = vmatpush1.bf16.msra.mxu0 %v814
    %1272 = vmatprep.subr.bf16.mxu0 0
    %1273 = vmatpush1.bf16.msra.mxu0 %v811
    %1274 = vmatprep.subr.bf16.mxu0 0
    %1275 = vmatpush1.bf16.msra.mxu0 %v808
    %1276 = vmatprep.subr.bf16.mxu0 0
    %1277 = vmatpush2.bf16.msra.mxu0 %v853
    %1278 = vmatprep.subr.bf16.mxu0 0
    %1279 = vmatpush2.bf16.msra.mxu0 %v850
    %1280 = vmatprep.subr.bf16.mxu0 0
    %1281 = vmatpush2.bf16.msra.mxu0 %v847
    %1282 = vmatprep.subr.bf16.mxu0 0
    %1283 = vmatpush2.bf16.msra.mxu0 %v844
    %1284 = vmatprep.subr.bf16.mxu0 0
    %1285 = vmatpush2.bf16.msra.mxu0 %v841
    %1286 = vmatprep.subr.bf16.mxu0 0
    %1287 = vmatpush2.bf16.msra.mxu0 %v838
    %1288 = vmatprep.subr.bf16.mxu0 0
    %1289 = vmatpush2.bf16.msra.mxu0 %v835
    %1290 = vmatprep.subr.bf16.mxu0 0
    %1291 = vmatpush2.bf16.msra.mxu0 %v832
    %1292 = vmatprep.mubr.bf16.mxu0 %v51
    %1293 = vmatmul.mubr.bf16.gmra.mxu0 %v50
    %v1294 = vpop.f32.mrf.mxu0
    %v1295 = vadd.f32 %v1255, %v1294
    %v1296 = vpop.f32.mrf.mxu0
    %v1297 = vpop.f32.mrf.mxu0
    %v1298 = vpop.f32.mrf.mxu0
    %1299 = vdwg.mxu0
    %1300 = vmatprep.subr.bf16.mxu0 0
    %1301 = vmatpush1.bf16.msra.mxu0 %v877
    %1302 = vmatprep.subr.bf16.mxu0 0
    %1303 = vmatpush1.bf16.msra.mxu0 %v874
    %1304 = vmatprep.subr.bf16.mxu0 0
    %1305 = vmatpush1.bf16.msra.mxu0 %v871
    %1306 = vmatprep.subr.bf16.mxu0 0
    %1307 = vmatpush1.bf16.msra.mxu0 %v868
    %1308 = vmatprep.subr.bf16.mxu0 0
    %1309 = vmatpush1.bf16.msra.mxu0 %v865
    %1310 = vmatprep.subr.bf16.mxu0 0
    %1311 = vmatpush1.bf16.msra.mxu0 %v862
    %1312 = vmatprep.subr.bf16.mxu0 0
    %1313 = vmatpush1.bf16.msra.mxu0 %v859
    %1314 = vmatprep.subr.bf16.mxu0 0
    %1315 = vmatpush1.bf16.msra.mxu0 %v856
    %1316 = vmatprep.subr.bf16.mxu0 0
    %1317 = vmatpush2.bf16.msra.mxu0 %v901
    %1318 = vmatprep.subr.bf16.mxu0 0
    %1319 = vmatpush2.bf16.msra.mxu0 %v898
    %1320 = vmatprep.subr.bf16.mxu0 0
    %1321 = vmatpush2.bf16.msra.mxu0 %v895
    %1322 = vmatprep.subr.bf16.mxu0 0
    %1323 = vmatpush2.bf16.msra.mxu0 %v892
    %1324 = vmatprep.subr.bf16.mxu0 0
    %1325 = vmatpush2.bf16.msra.mxu0 %v889
    %1326 = vmatprep.subr.bf16.mxu0 0
    %1327 = vmatpush2.bf16.msra.mxu0 %v886
    %1328 = vmatprep.subr.bf16.mxu0 0
    %1329 = vmatpush2.bf16.msra.mxu0 %v883
    %1330 = vmatprep.subr.bf16.mxu0 0
    %1331 = vmatpush2.bf16.msra.mxu0 %v880
    %1332 = vmatprep.mubr.bf16.mxu0 %v53
    %1333 = vmatmul.mubr.bf16.gmra.mxu0 %v52
    %v1334 = vpop.f32.mrf.mxu0
    %v1335 = vadd.f32 %v1295, %v1334
    %v1336 = vpop.f32.mrf.mxu0
    %v1337 = vpop.f32.mrf.mxu0
    %v1338 = vpop.f32.mrf.mxu0
    %1339 = vdwg.mxu0
    %1340 = vmatprep.subr.bf16.mxu0 0
    %1341 = vmatpush1.bf16.msra.mxu0 0
    %1342 = vmatprep.subr.bf16.mxu0 0
    %1343 = vmatpush1.bf16.msra.mxu0 0
    %1344 = vmatprep.subr.bf16.mxu0 0
    %1345 = vmatpush1.bf16.msra.mxu0 0
    %1346 = vmatprep.subr.bf16.mxu0 0
    %1347 = vmatpush1.bf16.msra.mxu0 0
    %1348 = vmatprep.subr.bf16.mxu0 0
    %1349 = vmatpush1.bf16.msra.mxu0 0
    %1350 = vmatprep.subr.bf16.mxu0 0
    %1351 = vmatpush1.bf16.msra.mxu0 0
    %1352 = vmatprep.subr.bf16.mxu0 0
    %1353 = vmatpush1.bf16.msra.mxu0 0
    %1354 = vmatprep.subr.bf16.mxu0 0
    %1355 = vmatpush1.bf16.msra.mxu0 %v904
    %1356 = vmatprep.subr.bf16.mxu0 0
    %1357 = vmatpush2.bf16.msra.mxu0 0
    %1358 = vmatprep.subr.bf16.mxu0 0
    %1359 = vmatpush2.bf16.msra.mxu0 0
    %1360 = vmatprep.subr.bf16.mxu0 0
    %1361 = vmatpush2.bf16.msra.mxu0 0
    %1362 = vmatprep.subr.bf16.mxu0 0
    %1363 = vmatpush2.bf16.msra.mxu0 0
    %1364 = vmatprep.subr.bf16.mxu0 0
    %1365 = vmatpush2.bf16.msra.mxu0 0
    %1366 = vmatprep.subr.bf16.mxu0 0
    %1367 = vmatpush2.bf16.msra.mxu0 0
    %1368 = vmatprep.subr.bf16.mxu0 0
    %1369 = vmatpush2.bf16.msra.mxu0 0
    %1370 = vmatprep.subr.bf16.mxu0 0
    %1371 = vmatpush2.bf16.msra.mxu0 0
    %1372 = vmatprep.mubr.bf16.mxu0 0
    %1373 = vmatmul.mubr.bf16.gmra.mxu0 %v1054
    %v1374 = vpop.f32.mrf.mxu0
    %v1375 = vadd.f32 %v1335, %v1374
    %v1376 = vpop.f32.mrf.mxu0
    %v1377 = vpop.f32.mrf.mxu0
    %v1378 = vpop.f32.mrf.mxu0
    %1379 = vdwg.mxu0
    %v1380 = vmax.f32 %v1214, 0.0
    %v1381 = vmax.f32 %v1216, 0.0
    %v1382 = vmax.f32 %v1375, 0.0
    %v1383 = vpack.c.bf16 %v1380, %v1380
    %v1384 = vpack.c.bf16 %v1381, %v1381
    %v1385 = vpack.c.bf16 %v1382, %v1382
    %v1386 = vld [vmem:[%s3] sm:$0xf]
    %v1387 = vld [vmem:[%s3 + $0x4] sm:$0xf]
    %v1388 = vld [vmem:[%s3 + $0x8] sm:$0xf]
    %v1389 = vld [vmem:[%s3 + $0xc] sm:$0xf]
    %v1390 = vld [vmem:[%s3 + $0x10] sm:$0xf]
    %v1391 = vld [vmem:[%s3 + $0x14] sm:$0xf]
    %v1392 = vld [vmem:[%s3 + $0x18] sm:$0xf]
    %v1393 = vld [vmem:[%s3 + $0x1c] sm:$0xf]
    %v1394 = vld [vmem:[%s3 + $0x20] sm:$0xf]
    %v1395 = vld [vmem:[%s3 + $0x24] sm:$0xf]
    %v1396 = vld [vmem:[%s3 + $0x28] sm:$0xf]
    %v1397 = vld [vmem:[%s3 + $0x2c] sm:$0xf]
    %v1398 = vld [vmem:[%s3 + $0x30] sm:$0xf]
    %v1399 = vld [vmem:[%s3 + $0x34] sm:$0xf]
    %v1400 = vld [vmem:[%s3 + $0x38] sm:$0xf]
    %v1401 = vld [vmem:[%s3 + $0x3c] sm:$0xf]
    %v1402 = vld [vmem:[%s3 + $0x40] sm:$0xf]
    %v1403 = vld [vmem:[%s3 + $0x44] sm:$0xf]
    %v1404 = vld [vmem:[%s3 + $0x48] sm:$0xf]
    %v1405 = vld [vmem:[%s3 + $0x4c] sm:$0xf]
    %v1406 = vld [vmem:[%s3 + $0x50] sm:$0xf]
    %v1407 = vld [vmem:[%s3 + $0x54] sm:$0xf]
    %v1408 = vld [vmem:[%s3 + $0x58] sm:$0xf]
    %v1409 = vld [vmem:[%s3 + $0x5c] sm:$0xf]
    %v1410 = vld [vmem:[%s3 + $0x60] sm:$0xf]
    %v1411 = vld [vmem:[%s3 + $0x64] sm:$0xf]
    %v1412 = vld [vmem:[%s3 + $0x68] sm:$0xf]
    %v1413 = vld [vmem:[%s3 + $0x6c] sm:$0xf]
    %v1414 = vld [vmem:[%s3 + $0x70] sm:$0xf]
    %v1415 = vld [vmem:[%s3 + $0x74] sm:$0xf]
    %v1416 = vld [vmem:[%s3 + $0x78] sm:$0xf]
    %v1417 = vld [vmem:[%s3 + $0x7c] sm:$0xf]
    %v1418 = vld [vmem:[%s3 + $0x80] sm:$0xf]
    %v1419 = vld [vmem:[%s3 + $0x84] sm:$0xf]
    %v1420 = vld [vmem:[%s3 + $0x88] sm:$0xf]
    %v1421 = vld [vmem:[%s3 + $0x8c] sm:$0xf]
    %v1422 = vld [vmem:[%s3 + $0x90] sm:$0xf]
    %v1423 = vld [vmem:[%s3 + $0x94] sm:$0xf]
    %v1424 = vld [vmem:[%s3 + $0x98] sm:$0xf]
    %v1425 = vld [vmem:[%s3 + $0x9c] sm:$0xf]
    %v1426 = vld [vmem:[%s3 + $0xa0] sm:$0xf]
    %v1427 = vld [vmem:[%s3 + $0xa4] sm:$0xf]
    %v1428 = vld [vmem:[%s3 + $0xa8] sm:$0xf]
    %v1429 = vld [vmem:[%s3 + $0xac] sm:$0xf]
    %v1430 = vld [vmem:[%s3 + $0xb0] sm:$0xf]
    %v1431 = vld [vmem:[%s3 + $0xb4] sm:$0xf]
    %v1432 = vld [vmem:[%s3 + $0xb8] sm:$0xf]
    %v1433 = vld [vmem:[%s3 + $0xbc] sm:$0xf]
    %v1434 = vld [vmem:[%s4] sm:$0x1]
    %v1436 = vlaneseq
    %v1437 = vshrl.u32 %v1436, 7
    %v1438 = vsub.s32 0, %v1437
    %v1439 = vrot.slane %v1434, %v1438
    %v1489 = vunpack.c.l.b16 %v1386
    %v1490 = vunpack.c.l.b16 %v1387
    %v1491 = vunpack.c.l.b16 %v1388
    %v1492 = vunpack.c.l.b16 %v1389
    %v1493 = vunpack.c.l.b16 %v1390
    %v1494 = vunpack.c.l.b16 %v1391
    %v1495 = vunpack.c.l.b16 %v1392
    %v1496 = vunpack.c.l.b16 %v1393
    %v1497 = vunpack.c.l.b16 %v1394
    %v1498 = vunpack.c.l.b16 %v1395
    %v1499 = vunpack.c.l.b16 %v1396
    %v1500 = vunpack.c.l.b16 %v1397
    %v1501 = vunpack.c.l.b16 %v1398
    %v1502 = vunpack.c.l.b16 %v1399
    %v1503 = vunpack.c.l.b16 %v1400
    %v1504 = vunpack.c.l.b16 %v1401
    %v1505 = vunpack.c.l.b16 %v1402
    %v1506 = vunpack.c.l.b16 %v1403
    %v1507 = vunpack.c.l.b16 %v1404
    %v1508 = vunpack.c.l.b16 %v1405
    %v1509 = vunpack.c.l.b16 %v1406
    %v1510 = vunpack.c.l.b16 %v1407
    %v1511 = vunpack.c.l.b16 %v1408
    %v1512 = vunpack.c.l.b16 %v1409
    %v1513 = vunpack.c.l.b16 %v1410
    %v1514 = vunpack.c.l.b16 %v1411
    %v1515 = vunpack.c.l.b16 %v1412
    %v1516 = vunpack.c.l.b16 %v1413
    %v1517 = vunpack.c.l.b16 %v1414
    %v1518 = vunpack.c.l.b16 %v1415
    %v1519 = vunpack.c.l.b16 %v1416
    %v1520 = vunpack.c.l.b16 %v1417
    %v1521 = vunpack.c.l.b16 %v1418
    %v1522 = vunpack.c.l.b16 %v1419
    %v1523 = vunpack.c.l.b16 %v1420
    %v1524 = vunpack.c.l.b16 %v1421
    %v1525 = vunpack.c.l.b16 %v1422
    %v1526 = vunpack.c.l.b16 %v1423
    %v1527 = vunpack.c.l.b16 %v1424
    %v1528 = vunpack.c.l.b16 %v1425
    %v1529 = vunpack.c.l.b16 %v1426
    %v1530 = vunpack.c.l.b16 %v1427
    %v1531 = vunpack.c.l.b16 %v1428
    %v1532 = vunpack.c.l.b16 %v1429
    %v1533 = vunpack.c.l.b16 %v1430
    %v1534 = vunpack.c.l.b16 %v1431
    %v1535 = vunpack.c.l.b16 %v1432
    %v1536 = vunpack.c.l.b16 %v1433
    %v1537 = vpack.c.b16 %v1490, %v1489
    %v1538 = vpack.c.b16 %v1492, %v1491
    %v1539 = vpack.c.b16 %v1494, %v1493
    %v1540 = vpack.c.b16 %v1496, %v1495
    %v1541 = vpack.c.b16 %v1498, %v1497
    %v1542 = vpack.c.b16 %v1500, %v1499
    %v1543 = vpack.c.b16 %v1502, %v1501
    %v1544 = vpack.c.b16 %v1504, %v1503
    %v1545 = vpack.c.b16 %v1506, %v1505
    %v1546 = vpack.c.b16 %v1508, %v1507
    %v1547 = vpack.c.b16 %v1510, %v1509
    %v1548 = vpack.c.b16 %v1512, %v1511
    %v1549 = vpack.c.b16 %v1514, %v1513
    %v1550 = vpack.c.b16 %v1516, %v1515
    %v1551 = vpack.c.b16 %v1518, %v1517
    %v1552 = vpack.c.b16 %v1520, %v1519
    %v1553 = vpack.c.b16 %v1522, %v1521
    %v1554 = vpack.c.b16 %v1524, %v1523
    %v1555 = vpack.c.b16 %v1526, %v1525
    %v1556 = vpack.c.b16 %v1528, %v1527
    %v1557 = vpack.c.b16 %v1530, %v1529
    %v1558 = vpack.c.b16 %v1532, %v1531
    %v1559 = vpack.c.b16 %v1534, %v1533
    %v1560 = vpack.c.b16 %v1536, %v1535
    %1585 = vmatprep.subr.bf16.mxu0 0
    %1586 = vmatpush1.bf16.msra.mxu0 %v1544
    %1587 = vmatprep.subr.bf16.mxu0 0
    %1588 = vmatpush1.bf16.msra.mxu0 %v1543
    %1589 = vmatprep.subr.bf16.mxu0 0
    %1590 = vmatpush1.bf16.msra.mxu0 %v1542
    %1591 = vmatprep.subr.bf16.mxu0 0
    %1592 = vmatpush1.bf16.msra.mxu0 %v1541
    %1593 = vmatprep.subr.bf16.mxu0 0
    %1594 = vmatpush1.bf16.msra.mxu0 %v1540
    %1595 = vmatprep.subr.bf16.mxu0 0
    %1596 = vmatpush1.bf16.msra.mxu0 %v1539
    %1597 = vmatprep.subr.bf16.mxu0 0
    %1598 = vmatpush1.bf16.msra.mxu0 %v1538
    %1599 = vmatprep.subr.bf16.mxu0 0
    %1600 = vmatpush1.bf16.msra.mxu0 %v1537
    %1601 = vmatprep.subr.bf16.mxu0 0
    %1602 = vmatpush2.bf16.msra.mxu0 %v1552
    %1603 = vmatprep.subr.bf16.mxu0 0
    %1604 = vmatpush2.bf16.msra.mxu0 %v1551
    %1605 = vmatprep.subr.bf16.mxu0 0
    %1606 = vmatpush2.bf16.msra.mxu0 %v1550
    %1607 = vmatprep.subr.bf16.mxu0 0
    %1608 = vmatpush2.bf16.msra.mxu0 %v1549
    %1609 = vmatprep.subr.bf16.mxu0 0
    %1610 = vmatpush2.bf16.msra.mxu0 %v1548
    %1611 = vmatprep.subr.bf16.mxu0 0
    %1612 = vmatpush2.bf16.msra.mxu0 %v1547
    %1613 = vmatprep.subr.bf16.mxu0 0
    %1614 = vmatpush2.bf16.msra.mxu0 %v1546
    %1615 = vmatprep.subr.bf16.mxu0 0
    %1616 = vmatpush2.bf16.msra.mxu0 %v1545
    %1617 = vmatprep.mubr.bf16.mxu0 %v1384
    %1618 = vmatmul.mubr.bf16.gmra.mxu0 %v1383
    %v1619 = vpop.f32.mrf.mxu0
    %v1620 = vadd.f32 %v1439, %v1619
    %v1621 = vpop.f32.mrf.mxu0
    %v1622 = vpop.f32.mrf.mxu0
    %v1623 = vpop.f32.mrf.mxu0
    %1624 = vdwg.mxu0
    %1625 = vmatprep.subr.bf16.mxu0 0
    %1626 = vmatpush1.bf16.msra.mxu0 %v1560
    %1627 = vmatprep.subr.bf16.mxu0 0
    %1628 = vmatpush1.bf16.msra.mxu0 %v1559
    %1629 = vmatprep.subr.bf16.mxu0 0
    %1630 = vmatpush1.bf16.msra.mxu0 %v1558
    %1631 = vmatprep.subr.bf16.mxu0 0
    %1632 = vmatpush1.bf16.msra.mxu0 %v1557
    %1633 = vmatprep.subr.bf16.mxu0 0
    %1634 = vmatpush1.bf16.msra.mxu0 %v1556
    %1635 = vmatprep.subr.bf16.mxu0 0
    %1636 = vmatpush1.bf16.msra.mxu0 %v1555
    %1637 = vmatprep.subr.bf16.mxu0 0
    %1638 = vmatpush1.bf16.msra.mxu0 %v1554
    %1639 = vmatprep.subr.bf16.mxu0 0
    %1640 = vmatpush1.bf16.msra.mxu0 %v1553
    %1641 = vmatprep.subr.bf16.mxu0 0
    %1642 = vmatpush2.bf16.msra.mxu0 0
    %1643 = vmatprep.subr.bf16.mxu0 0
    %1644 = vmatpush2.bf16.msra.mxu0 0
    %1645 = vmatprep.subr.bf16.mxu0 0
    %1646 = vmatpush2.bf16.msra.mxu0 0
    %1647 = vmatprep.subr.bf16.mxu0 0
    %1648 = vmatpush2.bf16.msra.mxu0 0
    %1649 = vmatprep.subr.bf16.mxu0 0
    %1650 = vmatpush2.bf16.msra.mxu0 0
    %1651 = vmatprep.subr.bf16.mxu0 0
    %1652 = vmatpush2.bf16.msra.mxu0 0
    %1653 = vmatprep.subr.bf16.mxu0 0
    %1654 = vmatpush2.bf16.msra.mxu0 0
    %1655 = vmatprep.subr.bf16.mxu0 0
    %1656 = vmatpush2.bf16.msra.mxu0 0
    %1657 = vmatprep.mubr.bf16.mxu0 0
    %1658 = vmatmul.mubr.bf16.gmra.mxu0 %v1385
    %v1659 = vpop.f32.mrf.mxu0
    %v1660 = vadd.f32 %v1620, %v1659
    %v1661 = vpop.f32.mrf.mxu0
    %v1662 = vpop.f32.mrf.mxu0
    %v1663 = vpop.f32.mrf.mxu0
    %1664 = vdwg.mxu0
    %v1665 = vmax.f32 %v1660, 0.0
    %v1666 = vpack.c.bf16 %v1665, %v1665
    %v1667 = vld [vmem:[%s5] sm:$0xf]
    %v1668 = vld [vmem:[%s5 + $0x4] sm:$0xf]
    %v1669 = vld [vmem:[%s5 + $0x8] sm:$0xf]
    %v1670 = vld [vmem:[%s5 + $0xc] sm:$0xf]
    %v1671 = vld [vmem:[%s5 + $0x10] sm:$0xf]
    %v1672 = vld [vmem:[%s5 + $0x14] sm:$0xf]
    %v1673 = vld [vmem:[%s5 + $0x18] sm:$0xf]
    %v1674 = vld [vmem:[%s5 + $0x1c] sm:$0xf]
    %v1675 = vld [vmem:[%s5 + $0x20] sm:$0xf]
    %v1676 = vld [vmem:[%s5 + $0x24] sm:$0xf]
    %v1677 = vld [vmem:[%s5 + $0x28] sm:$0xf]
    %v1678 = vld [vmem:[%s5 + $0x2c] sm:$0xf]
    %v1679 = vld [vmem:[%s5 + $0x30] sm:$0xf]
    %v1680 = vld [vmem:[%s5 + $0x34] sm:$0xf]
    %v1681 = vld [vmem:[%s5 + $0x38] sm:$0xf]
    %v1682 = vld [vmem:[%s5 + $0x3c] sm:$0xf]
    %v1683 = vld [vmem:[%s6] sm:$0x1]
    %v1685 = vlaneseq
    %v1686 = vshrl.u32 %v1685, 7
    %v1687 = vsub.s32 0, %v1686
    %v1688 = vrot.slane %v1683, %v1687
    %v1706 = vunpack.c.l.b16 %v1667
    %v1707 = vunpack.c.l.b16 %v1668
    %v1708 = vunpack.c.l.b16 %v1669
    %v1709 = vunpack.c.l.b16 %v1670
    %v1710 = vunpack.c.l.b16 %v1671
    %v1711 = vunpack.c.l.b16 %v1672
    %v1712 = vunpack.c.l.b16 %v1673
    %v1713 = vunpack.c.l.b16 %v1674
    %v1714 = vunpack.c.l.b16 %v1675
    %v1715 = vunpack.c.l.b16 %v1676
    %v1716 = vunpack.c.l.b16 %v1677
    %v1717 = vunpack.c.l.b16 %v1678
    %v1718 = vunpack.c.l.b16 %v1679
    %v1719 = vunpack.c.l.b16 %v1680
    %v1720 = vunpack.c.l.b16 %v1681
    %v1721 = vunpack.c.l.b16 %v1682
    %v1722 = vpack.c.b16 %v1707, %v1706
    %v1723 = vpack.c.b16 %v1709, %v1708
    %v1724 = vpack.c.b16 %v1711, %v1710
    %v1725 = vpack.c.b16 %v1713, %v1712
    %v1726 = vpack.c.b16 %v1715, %v1714
    %v1727 = vpack.c.b16 %v1717, %v1716
    %v1728 = vpack.c.b16 %v1719, %v1718
    %v1729 = vpack.c.b16 %v1721, %v1720
    %1738 = vmatprep.subr.bf16.mxu0 0
    %1739 = vmatpush1.bf16.msra.mxu0 %v1729
    %1740 = vmatprep.subr.bf16.mxu0 0
    %1741 = vmatpush1.bf16.msra.mxu0 %v1728
    %1742 = vmatprep.subr.bf16.mxu0 0
    %1743 = vmatpush1.bf16.msra.mxu0 %v1727
    %1744 = vmatprep.subr.bf16.mxu0 0
    %1745 = vmatpush1.bf16.msra.mxu0 %v1726
    %1746 = vmatprep.subr.bf16.mxu0 0
    %1747 = vmatpush1.bf16.msra.mxu0 %v1725
    %1748 = vmatprep.subr.bf16.mxu0 0
    %1749 = vmatpush1.bf16.msra.mxu0 %v1724
    %1750 = vmatprep.subr.bf16.mxu0 0
    %1751 = vmatpush1.bf16.msra.mxu0 %v1723
    %1752 = vmatprep.subr.bf16.mxu0 0
    %1753 = vmatpush1.bf16.msra.mxu0 %v1722
    %1754 = vmatprep.subr.bf16.mxu0 0
    %1755 = vmatpush2.bf16.msra.mxu0 0
    %1756 = vmatprep.subr.bf16.mxu0 0
    %1757 = vmatpush2.bf16.msra.mxu0 0
    %1758 = vmatprep.subr.bf16.mxu0 0
    %1759 = vmatpush2.bf16.msra.mxu0 0
    %1760 = vmatprep.subr.bf16.mxu0 0
    %1761 = vmatpush2.bf16.msra.mxu0 0
    %1762 = vmatprep.subr.bf16.mxu0 0
    %1763 = vmatpush2.bf16.msra.mxu0 0
    %1764 = vmatprep.subr.bf16.mxu0 0
    %1765 = vmatpush2.bf16.msra.mxu0 0
    %1766 = vmatprep.subr.bf16.mxu0 0
    %1767 = vmatpush2.bf16.msra.mxu0 0
    %1768 = vmatprep.subr.bf16.mxu0 0
    %1769 = vmatpush2.bf16.msra.mxu0 0
    %1770 = vmatprep.mubr.bf16.mxu0 0
    %1771 = vmatmul.mubr.bf16.gmra.mxu0 %v1666
    %v1772 = vpop.f32.mrf.mxu0
    %v1773 = vadd.f32 %v1688, %v1772
    %v1774 = vpop.f32.mrf.mxu0
    %v1775 = vpop.f32.mrf.mxu0
    %v1776 = vpop.f32.mrf.mxu0
    %1777 = vdwg.mxu0
    %v1778 = vpack.c.bf16 %v1773, %v1773
    %1779 = vst [vmem:[%s7] sm:$0xf] %v1778
    // Predicated region
    $region34: #{fc1_forward.1} parent=1 // pred_check
      _
    $region35: #{fc1_forward.1} parent=1 // pred_check_branch
      %1781 = sbr.rel (0) target = $region37
    $region36: #{fc1_forward.1} parent=1 // pred_region
      _
    $region37: #{fc1_forward.1} parent=1 // pred_fallthru
      _
    // Predicated region
    $region38: #{fc1_forward.1} parent=1 // pred_check
      _
    $region39: #{fc1_forward.1} parent=1 // pred_check_branch
      %1783 = sbr.rel (0) target = $region41
    $region40: #{fc1_forward.1} parent=1 // pred_region
      _
    $region41: #{fc1_forward.1} parent=1 // pred_fallthru
      _
    %1784 = vsyncpa [#allocation3], 1

</llo_original>
